<compile_context>
chip_gen: v6e
topology: v6e:2x2x1
jax: 0.10.0
libtpu: 0.0.40
codegen_flags: <defaults>
</compile_context>

<pallas_src>
import functools

import jax
import jax.numpy as jnp
from jax.experimental import pallas as pl
from jax.experimental.pallas import tpu as pltpu


# ----------------------------------------------------------------------------
# Helpers
# ----------------------------------------------------------------------------
def _round_up(n, m):
    return ((n + m - 1) // m) * m


def _pad2d(a, rows, cols):
    """Zero-pad a 2-D array up to [rows, cols]."""
    return jnp.zeros((rows, cols), a.dtype).at[: a.shape[0], : a.shape[1]].set(a)


# ----------------------------------------------------------------------------
# Fused kernel: single invocation, statically unrolled over the 3 VAEs.
# Inputs: stacked activations + one packed weight slab + one packed bias slab.
# ----------------------------------------------------------------------------
def _fused_multiple_vae_kernel(x_ref, eps_ref, w_ref, b_ref, out_ref,
                               *, d_pad, h_pad, l_pad):
    # Static row offsets into the packed weight slab (all multiples of 128,
    # so every slice below is tile-aligned -> no masked loads/stores).
    r_w1 = 0                         # W1  : [d_pad, h_pad]
    r_wml = d_pad                    # WML : [h_pad, 2*l_pad]  (fused mu|logvar)
    r_w3 = d_pad + h_pad             # W3  : [l_pad, h_pad]
    r_w4 = d_pad + h_pad + l_pad     # W4  : [h_pad, d_pad]

    for v in range(3):               # static unroll: x-VAE, y-VAE, xy-VAE
        x = x_ref[v]                 # [Bp, Dp] f32 (zero-padded lanes)
        eps = eps_ref[v]             # [Bp, Lp] f32 (zero-padded lanes)

        w1 = w_ref[v, r_w1:r_w1 + d_pad, :h_pad]          # bf16
        wml = w_ref[v, r_wml:r_wml + h_pad, :2 * l_pad]   # bf16
        w3 = w_ref[v, r_w3:r_w3 + l_pad, :h_pad]          # bf16
        w4 = w_ref[v, r_w4:r_w4 + h_pad, :d_pad]          # bf16
        b1 = b_ref[v, 0:1, :h_pad]                        # f32 (1, Hp)
        bml = b_ref[v, 1:2, :2 * l_pad]                   # f32 (1, 2Lp)
        b3 = b_ref[v, 2:3, :h_pad]                        # f32 (1, Hp)
        b4 = b_ref[v, 3:4, :d_pad]                        # f32 (1, Dp)

        # Encoder (bf16 MXU inputs, f32 accumulation).
        h = jnp.dot(x.astype(jnp.bfloat16), w1,
                    preferred_element_type=jnp.float32) + b1
        h = jnp.maximum(h, 0.0)

        # Fused mu|logvar head: one matmul producing [Bp, 2*Lp].
        ml = jnp.dot(h.astype(jnp.bfloat16), wml,
                     preferred_element_type=jnp.float32) + bml
        mu = ml[:, :l_pad]
        logvar = ml[:, l_pad:]

        # Reparameterization: z = mu + exp(0.5 * logvar) * eps
        z = mu + jnp.exp(0.5 * logvar) * eps

        # Decoder.
        h2 = jnp.dot(z.astype(jnp.bfloat16), w3,
                     preferred_element_type=jnp.float32) + b3
        h2 = jnp.maximum(h2, 0.0)
        logits = jnp.dot(h2.astype(jnp.bfloat16), w4,
                         preferred_element_type=jnp.float32) + b4
        recon = jax.nn.sigmoid(logits)

        # Four direct, 128-lane-aligned, unmasked stores (no concat temp).
        out_ref[v, :, 0:d_pad] = recon
        out_ref[v, :, d_pad:d_pad + l_pad] = mu
        out_ref[v, :, d_pad + l_pad:d_pad + 2 * l_pad] = logvar
        out_ref[v, :, d_pad + 2 * l_pad:d_pad + 3 * l_pad] = z


# ----------------------------------------------------------------------------
# Parameter construction (deterministic, in-script)
# ----------------------------------------------------------------------------
def make_vae_params(key, in_dim, hidden_dim, latent_dim):
    ks = jax.random.split(key, 10)

    def dense(kw, kb, fan_in, fan_out):
        scale = 1.0 / jnp.sqrt(jnp.float32(fan_in))
        w = jax.random.uniform(kw, (fan_in, fan_out), jnp.float32, -scale, scale)
        b = jax.random.uniform(kb, (1, fan_out), jnp.float32, -scale, scale)
        return w, b

    w1, b1 = dense(ks[0], ks[1], in_dim, hidden_dim)
    wmu, bmu = dense(ks[2], ks[3], hidden_dim, latent_dim)
    wlv, blv = dense(ks[4], ks[5], hidden_dim, latent_dim)
    w3, b3 = dense(ks[6], ks[7], latent_dim, hidden_dim)
    w4, b4 = dense(ks[8], ks[9], hidden_dim, in_dim)
    return (w1, b1, wmu, bmu, wlv, blv, w3, b3, w4, b4)


# ----------------------------------------------------------------------------
# One-time packing: all weights of one VAE -> one lane-dense bf16 slab,
# all biases -> one small f32 slab.  (Hoisted out of the per-call path.)
# ----------------------------------------------------------------------------
def _pack_one_vae(params, d_pad, h_pad, l_pad):
    w1, b1, wmu, bmu, wlv, blv, w3, b3, w4, b4 = params
    col_w = max(h_pad, 2 * l_pad, d_pad)
    rows = d_pad + 2 * h_pad + l_pad

    w = jnp.zeros((rows, col_w), jnp.float32)
    w = w.at[0:w1.shape[0], 0:w1.shape[1]].set(w1)                      # W1
    r = d_pad
    w = w.at[r:r + wmu.shape[0], 0:wmu.shape[1]].set(wmu)               # WML: mu
    w = w.at[r:r + wlv.shape[0], l_pad:l_pad + wlv.shape[1]].set(wlv)   # WML: logvar
    r = d_pad + h_pad
    w = w.at[r:r + w3.shape[0], 0:w3.shape[1]].set(w3)                  # W3
    r = d_pad + h_pad + l_pad
    w = w.at[r:r + w4.shape[0], 0:w4.shape[1]].set(w4)                  # W4

    b = jnp.zeros((8, col_w), jnp.float32)
    b = b.at[0, :b1.shape[1]].set(b1[0])
    b = b.at[1, :bmu.shape[1]].set(bmu[0])
    b = b.at[1, l_pad:l_pad + blv.shape[1]].set(blv[0])
    b = b.at[2, :b3.shape[1]].set(b3[0])
    b = b.at[3, :b4.shape[1]].set(b4[0])
    return w.astype(jnp.bfloat16), b


# ----------------------------------------------------------------------------
# Builder: pack once, return a jitted forward (the per-call hot path).
# ----------------------------------------------------------------------------
def build_multiple_vae_forward(params_x, params_y, params_xy):
    dx = params_x[0].shape[0]
    dy = params_y[0].shape[0]
    dxy = params_xy[0].shape[0]
    assert dxy == dx + dy
    H = params_x[0].shape[1]
    L = params_x[2].shape[1]

    d_pad = _round_up(max(dx, dy, dxy), 128)
    h_pad = _round_up(H, 128)
    l_pad = _round_up(L, 128)
    out_w = d_pad + 3 * l_pad

    # --- ONE-TIME packing (cached; never re-run per forward call) -----------
    ws, bs = [], []
    for p in (params_x, params_y, params_xy):
        w, b = _pack_one_vae(p, d_pad, h_pad, l_pad)
        ws.append(w)
        bs.append(b)
    w_slab = jnp.stack(ws, axis=0)   # [3, d_pad+2*h_pad+l_pad, col_w] bf16
    b_slab = jnp.stack(bs, axis=0)   # [3, 8, col_w]                   f32

    kernel = functools.partial(_fused_multiple_vae_kernel,
                               d_pad=d_pad, h_pad=h_pad, l_pad=l_pad)
    vmem_spec = pl.BlockSpec(memory_space=pltpu.MemorySpace.VMEM)

    @jax.jit
    def forward(x, y, eps_x, eps_y, eps_xy):
        B = x.shape[0]
        b_pad = _round_up(B, 8)
        xy = jnp.concatenate([x, y], axis=1)       # torch.cat([x, y], dim=1)

        # Lane-dense stacked activations (padding+stacking fuses under jit).
        X = jnp.stack([_pad2d(x, b_pad, d_pad),
                       _pad2d(y, b_pad, d_pad),
                       _pad2d(xy, b_pad, d_pad)], axis=0)
        EPS = jnp.stack([_pad2d(eps_x, b_pad, l_pad),
                         _pad2d(eps_y, b_pad, l_pad),
                         _pad2d(eps_xy, b_pad, l_pad)], axis=0)

        # Single pallas_call, no grid: 4 input DMAs + 1 output DMA total, all
        # three VAEs' weights resident in VMEM for the whole kernel.
        out = pl.pallas_call(
            kernel,
            out_shape=jax.ShapeDtypeStruct((3, b_pad, out_w), jnp.float32),
            in_specs=[vmem_spec, vmem_spec, vmem_spec, vmem_spec],
            out_specs=vmem_spec,
        )(X, EPS, w_slab, b_slab)

        def unpack(v, inp):
            d_in = inp.shape[1]
            recon = out[v, :B, :d_in]
            mu = out[v, :B, d_pad:d_pad + L]
            logvar = out[v, :B, d_pad + l_pad:d_pad + l_pad + L]
            z = out[v, :B, d_pad + 2 * l_pad:d_pad + 2 * l_pad + L]
            return (recon, inp, mu, logvar, z)

        return {"x": unpack(0, x), "y": unpack(1, y), "xy": unpack(2, xy)}

    return forward


# ----------------------------------------------------------------------------
# Pure-JAX f32 reference (for a loose-tolerance sanity check of the bf16 path)
# ----------------------------------------------------------------------------
def _vae_reference(params, x, eps):
    w1, b1, wmu, bmu, wlv, blv, w3, b3, w4, b4 = params
    h = jnp.maximum(x @ w1 + b1, 0.0)
    mu = h @ wmu + bmu
    logvar = h @ wlv + blv
    z = mu + jnp.exp(0.5 * logvar) * eps
    h2 = jnp.maximum(z @ w3 + b3, 0.0)
    recon = jax.nn.sigmoid(h2 @ w4 + b4)
    return (recon, x, mu, logvar, z)


if __name__ == "__main__":
    B = 8          # batch
    DX = 16        # x feature dim
    DY = 16        # y feature dim
    H = 32         # hidden dim
    L = 8          # latent dim

    root = jax.random.PRNGKey(0)
    k_x, k_y, k_px, k_py, k_pxy, k_ex, k_ey, k_exy = jax.random.split(root, 8)

    x = jax.random.normal(k_x, (B, DX), jnp.float32)
    y = jax.random.normal(k_y, (B, DY), jnp.float32)

    params_x = make_vae_params(k_px, DX, H, L)
    params_y = make_vae_params(k_py, DY, H, L)
    params_xy = make_vae_params(k_pxy, DX + DY, H, L)

    # Deterministic reparameterization noise (one eps per VAE).
    eps_x = jax.random.normal(k_ex, (B, L), jnp.float32)
    eps_y = jax.random.normal(k_ey, (B, L), jnp.float32)
    eps_xy = jax.random.normal(k_exy, (B, L), jnp.float32)

    # Pack once at init; forward is the jitted hot path.
    forward = build_multiple_vae_forward(params_x, params_y, params_xy)

    out = forward(x, y, eps_x, eps_y, eps_xy)
    jax.block_until_ready(out)
    out = forward(x, y, eps_x, eps_y, eps_xy)   # cached-executable path
    jax.block_until_ready(out)

    # Shape sanity: (recon, input, mu, logvar, z); [4] is the latent z.
    assert out["x"][0].shape == (B, DX)
    assert out["y"][0].shape == (B, DY)
    assert out["xy"][0].shape == (B, DX + DY)
    assert out["x"][4].shape == out["y"][4].shape == out["xy"][4].shape == (B, L)

    # Numerical sanity vs f32 reference (bf16 MXU path -> loose tolerance).
    ref = {
        "x": _vae_reference(params_x, x, eps_x),
        "y": _vae_reference(params_y, y, eps_y),
        "xy": _vae_reference(params_xy, jnp.concatenate([x, y], axis=1), eps_xy),
    }
    for name in ("x", "y", "xy"):
        for idx in (0, 2, 3, 4):   # recon, mu, logvar, z
            got, want = out[name][idx], ref[name][idx]
            assert got.shape == want.shape, (name, idx, got.shape, want.shape)
            assert jnp.allclose(got, want, atol=3e-2, rtol=3e-2), (name, idx)

    print("KERNEL_OK")
</pallas_src>

<mosaic_0001>
module attributes {stable_mosaic.version = 11 : i64} {
  func.func @_fused_multiple_vae_kernel(%arg0: memref<3x8x128xf32, #tpu.memory_space<vmem>>, %arg1: memref<3x8x128xf32, #tpu.memory_space<vmem>>, %arg2: memref<3x512x256xbf16, #tpu.memory_space<vmem>>, %arg3: memref<3x8x256xf32, #tpu.memory_space<vmem>>, %arg4: memref<3x8x512xf32, #tpu.memory_space<vmem>>) attributes {dimension_semantics = [], scalar_prefetch = 0 : i64, scratch_operands = 0 : i64, tpu.core_type = #tpu.core_type<tc>} {
    %c0 = arith.constant 0 : index
    %c0_0 = arith.constant 0 : index
    %c0_1 = arith.constant 0 : index
    %0 = vector.load %arg0[%c0, %c0_0, %c0_1] : memref<3x8x128xf32, #tpu.memory_space<vmem>>, vector<1x8x128xf32>
    %1 = vector.shape_cast %0 : vector<1x8x128xf32> to vector<8x128xf32>
    %c0_2 = arith.constant 0 : index
    %c0_3 = arith.constant 0 : index
    %c0_4 = arith.constant 0 : index
    %2 = vector.load %arg1[%c0_2, %c0_3, %c0_4] : memref<3x8x128xf32, #tpu.memory_space<vmem>>, vector<1x8x128xf32>
    %3 = vector.shape_cast %2 : vector<1x8x128xf32> to vector<8x128xf32>
    %c0_5 = arith.constant 0 : index
    %c0_6 = arith.constant 0 : index
    %c0_7 = arith.constant 0 : index
    %4 = vector.load %arg2[%c0_5, %c0_6, %c0_7] : memref<3x512x256xbf16, #tpu.memory_space<vmem>>, vector<1x128x128xbf16>
    %5 = vector.shape_cast %4 : vector<1x128x128xbf16> to vector<128x128xbf16>
    %c0_8 = arith.constant 0 : index
    %c128 = arith.constant 128 : index
    %c0_9 = arith.constant 0 : index
    %6 = vector.load %arg2[%c0_8, %c128, %c0_9] : memref<3x512x256xbf16, #tpu.memory_space<vmem>>, vector<1x128x256xbf16>
    %7 = vector.shape_cast %6 : vector<1x128x256xbf16> to vector<128x256xbf16>
    %c0_10 = arith.constant 0 : index
    %c256 = arith.constant 256 : index
    %c0_11 = arith.constant 0 : index
    %8 = vector.load %arg2[%c0_10, %c256, %c0_11] : memref<3x512x256xbf16, #tpu.memory_space<vmem>>, vector<1x128x128xbf16>
    %9 = vector.shape_cast %8 : vector<1x128x128xbf16> to vector<128x128xbf16>
    %c0_12 = arith.constant 0 : index
    %c384 = arith.constant 384 : index
    %c0_13 = arith.constant 0 : index
    %10 = vector.load %arg2[%c0_12, %c384, %c0_13] : memref<3x512x256xbf16, #tpu.memory_space<vmem>>, vector<1x128x128xbf16>
    %11 = vector.shape_cast %10 : vector<1x128x128xbf16> to vector<128x128xbf16>
    %c0_14 = arith.constant 0 : index
    %c0_15 = arith.constant 0 : index
    %c0_16 = arith.constant 0 : index
    %12 = vector.load %arg3[%c0_14, %c0_15, %c0_16] : memref<3x8x256xf32, #tpu.memory_space<vmem>>, vector<1x1x128xf32>
    %13 = vector.shape_cast %12 : vector<1x1x128xf32> to vector<1x128xf32>
    %c0_17 = arith.constant 0 : index
    %c1 = arith.constant 1 : index
    %c0_18 = arith.constant 0 : index
    %14 = vector.load %arg3[%c0_17, %c1, %c0_18] : memref<3x8x256xf32, #tpu.memory_space<vmem>>, vector<1x1x256xf32>
    %15 = vector.shape_cast %14 : vector<1x1x256xf32> to vector<1x256xf32>
    %c0_19 = arith.constant 0 : index
    %c2 = arith.constant 2 : index
    %c0_20 = arith.constant 0 : index
    %16 = vector.load %arg3[%c0_19, %c2, %c0_20] : memref<3x8x256xf32, #tpu.memory_space<vmem>>, vector<1x1x128xf32>
    %17 = vector.shape_cast %16 : vector<1x1x128xf32> to vector<1x128xf32>
    %c0_21 = arith.constant 0 : index
    %c3 = arith.constant 3 : index
    %c0_22 = arith.constant 0 : index
    %18 = vector.load %arg3[%c0_21, %c3, %c0_22] : memref<3x8x256xf32, #tpu.memory_space<vmem>>, vector<1x1x128xf32>
    %19 = vector.shape_cast %18 : vector<1x1x128xf32> to vector<1x128xf32>
    %20 = arith.truncf %1 : vector<8x128xf32> to vector<8x128xbf16>
    %cst = arith.constant dense<0.000000e+00> : vector<8x128xf32>
    %21 = tpu.matmul %20, %5, %cst {dimension_numbers = #tpu.dot_dimension_numbers<[1], [0], [0], [1], [0, 0, 1, 1], [], []>} : vector<8x128xbf16>, vector<128x128xbf16>, vector<8x128xf32> -> vector<8x128xf32>
    %22 = vector.broadcast %13 : vector<1x128xf32> to vector<8x128xf32>
    %23 = arith.addf %21, %22 : vector<8x128xf32>
    %cst_23 = arith.constant 0.000000e+00 : f32
    %24 = vector.broadcast %cst_23 : f32 to vector<8x128xf32>
    %25 = arith.maximumf %23, %24 : vector<8x128xf32>
    %26 = arith.truncf %25 : vector<8x128xf32> to vector<8x128xbf16>
    %cst_24 = arith.constant dense<0.000000e+00> : vector<8x256xf32>
    %27 = tpu.matmul %26, %7, %cst_24 {dimension_numbers = #tpu.dot_dimension_numbers<[1], [0], [0], [1], [0, 0, 1, 1], [], []>} : vector<8x128xbf16>, vector<128x256xbf16>, vector<8x256xf32> -> vector<8x256xf32>
    %28 = vector.broadcast %15 : vector<1x256xf32> to vector<8x256xf32>
    %29 = arith.addf %27, %28 : vector<8x256xf32>
    %30 = vector.extract_strided_slice %29 {offsets = [0, 0], sizes = [8, 128], strides = [1, 1]} : vector<8x256xf32> to vector<8x128xf32>
    %31 = vector.extract_strided_slice %29 {offsets = [0, 128], sizes = [8, 128], strides = [1, 1]} : vector<8x256xf32> to vector<8x128xf32>
    %cst_25 = arith.constant 5.000000e-01 : f32
    %32 = vector.broadcast %cst_25 : f32 to vector<8x128xf32>
    %33 = arith.mulf %32, %31 : vector<8x128xf32>
    %34 = math.exp %33 : vector<8x128xf32>
    %35 = arith.mulf %34, %3 : vector<8x128xf32>
    %36 = arith.addf %30, %35 : vector<8x128xf32>
    %37 = arith.truncf %36 : vector<8x128xf32> to vector<8x128xbf16>
    %cst_26 = arith.constant dense<0.000000e+00> : vector<8x128xf32>
    %38 = tpu.matmul %37, %9, %cst_26 {dimension_numbers = #tpu.dot_dimension_numbers<[1], [0], [0], [1], [0, 0, 1, 1], [], []>} : vector<8x128xbf16>, vector<128x128xbf16>, vector<8x128xf32> -> vector<8x128xf32>
    %39 = vector.broadcast %17 : vector<1x128xf32> to vector<8x128xf32>
    %40 = arith.addf %38, %39 : vector<8x128xf32>
    %cst_27 = arith.constant 0.000000e+00 : f32
    %41 = vector.broadcast %cst_27 : f32 to vector<8x128xf32>
    %42 = arith.maximumf %40, %41 : vector<8x128xf32>
    %43 = arith.truncf %42 : vector<8x128xf32> to vector<8x128xbf16>
    %cst_28 = arith.constant dense<0.000000e+00> : vector<8x128xf32>
    %44 = tpu.matmul %43, %11, %cst_28 {dimension_numbers = #tpu.dot_dimension_numbers<[1], [0], [0], [1], [0, 0, 1, 1], [], []>} : vector<8x128xbf16>, vector<128x128xbf16>, vector<8x128xf32> -> vector<8x128xf32>
    %45 = vector.broadcast %19 : vector<1x128xf32> to vector<8x128xf32>
    %46 = arith.addf %44, %45 : vector<8x128xf32>
    %47 = arith.negf %46 : vector<8x128xf32>
    %48 = math.exp %47 : vector<8x128xf32>
    %cst_29 = arith.constant 1.000000e+00 : f32
    %49 = vector.broadcast %cst_29 : f32 to vector<8x128xf32>
    %50 = arith.addf %49, %48 : vector<8x128xf32>
    %51 = arith.divf %49, %50 : vector<8x128xf32>
    %c0_30 = arith.constant 0 : index
    %c0_31 = arith.constant 0 : index
    %c0_32 = arith.constant 0 : index
    %52 = vector.load %arg4[%c0_30, %c0_31, %c0_32] : memref<3x8x512xf32, #tpu.memory_space<vmem>>, vector<1x8x128xf32>
    %53 = vector.shape_cast %52 : vector<1x8x128xf32> to vector<8x128xf32>
    %54 = vector.shape_cast %51 : vector<8x128xf32> to vector<1x8x128xf32>
    tpu.vector_store %arg4[%c0_30, %c0_31, %c0_32], %54 {strides = array<i32>} : memref<3x8x512xf32, #tpu.memory_space<vmem>>, vector<1x8x128xf32>,
    %c0_33 = arith.constant 0 : index
    %c0_34 = arith.constant 0 : index
    %c128_35 = arith.constant 128 : index
    %55 = vector.load %arg4[%c0_33, %c0_34, %c128_35] : memref<3x8x512xf32, #tpu.memory_space<vmem>>, vector<1x8x128xf32>
    %56 = vector.shape_cast %55 : vector<1x8x128xf32> to vector<8x128xf32>
    %57 = vector.shape_cast %30 : vector<8x128xf32> to vector<1x8x128xf32>
    tpu.vector_store %arg4[%c0_33, %c0_34, %c128_35], %57 {strides = array<i32>} : memref<3x8x512xf32, #tpu.memory_space<vmem>>, vector<1x8x128xf32>,
    %c0_36 = arith.constant 0 : index
    %c0_37 = arith.constant 0 : index
    %c256_38 = arith.constant 256 : index
    %58 = vector.load %arg4[%c0_36, %c0_37, %c256_38] : memref<3x8x512xf32, #tpu.memory_space<vmem>>, vector<1x8x128xf32>
    %59 = vector.shape_cast %58 : vector<1x8x128xf32> to vector<8x128xf32>
    %60 = vector.shape_cast %31 : vector<8x128xf32> to vector<1x8x128xf32>
    tpu.vector_store %arg4[%c0_36, %c0_37, %c256_38], %60 {strides = array<i32>} : memref<3x8x512xf32, #tpu.memory_space<vmem>>, vector<1x8x128xf32>,
    %c0_39 = arith.constant 0 : index
    %c0_40 = arith.constant 0 : index
    %c384_41 = arith.constant 384 : index
    %61 = vector.load %arg4[%c0_39, %c0_40, %c384_41] : memref<3x8x512xf32, #tpu.memory_space<vmem>>, vector<1x8x128xf32>
    %62 = vector.shape_cast %61 : vector<1x8x128xf32> to vector<8x128xf32>
    %63 = vector.shape_cast %36 : vector<8x128xf32> to vector<1x8x128xf32>
    tpu.vector_store %arg4[%c0_39, %c0_40, %c384_41], %63 {strides = array<i32>} : memref<3x8x512xf32, #tpu.memory_space<vmem>>, vector<1x8x128xf32>,
    %c1_42 = arith.constant 1 : index
    %c0_43 = arith.constant 0 : index
    %c0_44 = arith.constant 0 : index
    %64 = vector.load %arg0[%c1_42, %c0_43, %c0_44] : memref<3x8x128xf32, #tpu.memory_space<vmem>>, vector<1x8x128xf32>
    %65 = vector.shape_cast %64 : vector<1x8x128xf32> to vector<8x128xf32>
    %c1_45 = arith.constant 1 : index
    %c0_46 = arith.constant 0 : index
    %c0_47 = arith.constant 0 : index
    %66 = vector.load %arg1[%c1_45, %c0_46, %c0_47] : memref<3x8x128xf32, #tpu.memory_space<vmem>>, vector<1x8x128xf32>
    %67 = vector.shape_cast %66 : vector<1x8x128xf32> to vector<8x128xf32>
    %c1_48 = arith.constant 1 : index
    %c0_49 = arith.constant 0 : index
    %c0_50 = arith.constant 0 : index
    %68 = vector.load %arg2[%c1_48, %c0_49, %c0_50] : memref<3x512x256xbf16, #tpu.memory_space<vmem>>, vector<1x128x128xbf16>
    %69 = vector.shape_cast %68 : vector<1x128x128xbf16> to vector<128x128xbf16>
    %c1_51 = arith.constant 1 : index
    %c128_52 = arith.constant 128 : index
    %c0_53 = arith.constant 0 : index
    %70 = vector.load %arg2[%c1_51, %c128_52, %c0_53] : memref<3x512x256xbf16, #tpu.memory_space<vmem>>, vector<1x128x256xbf16>
    %71 = vector.shape_cast %70 : vector<1x128x256xbf16> to vector<128x256xbf16>
    %c1_54 = arith.constant 1 : index
    %c256_55 = arith.constant 256 : index
    %c0_56 = arith.constant 0 : index
    %72 = vector.load %arg2[%c1_54, %c256_55, %c0_56] : memref<3x512x256xbf16, #tpu.memory_space<vmem>>, vector<1x128x128xbf16>
    %73 = vector.shape_cast %72 : vector<1x128x128xbf16> to vector<128x128xbf16>
    %c1_57 = arith.constant 1 : index
    %c384_58 = arith.constant 384 : index
    %c0_59 = arith.constant 0 : index
    %74 = vector.load %arg2[%c1_57, %c384_58, %c0_59] : memref<3x512x256xbf16, #tpu.memory_space<vmem>>, vector<1x128x128xbf16>
    %75 = vector.shape_cast %74 : vector<1x128x128xbf16> to vector<128x128xbf16>
    %c1_60 = arith.constant 1 : index
    %c0_61 = arith.constant 0 : index
    %c0_62 = arith.constant 0 : index
    %76 = vector.load %arg3[%c1_60, %c0_61, %c0_62] : memref<3x8x256xf32, #tpu.memory_space<vmem>>, vector<1x1x128xf32>
    %77 = vector.shape_cast %76 : vector<1x1x128xf32> to vector<1x128xf32>
    %c1_63 = arith.constant 1 : index
    %c1_64 = arith.constant 1 : index
    %c0_65 = arith.constant 0 : index
    %78 = vector.load %arg3[%c1_63, %c1_64, %c0_65] : memref<3x8x256xf32, #tpu.memory_space<vmem>>, vector<1x1x256xf32>
    %79 = vector.shape_cast %78 : vector<1x1x256xf32> to vector<1x256xf32>
    %c1_66 = arith.constant 1 : index
    %c2_67 = arith.constant 2 : index
    %c0_68 = arith.constant 0 : index
    %80 = vector.load %arg3[%c1_66, %c2_67, %c0_68] : memref<3x8x256xf32, #tpu.memory_space<vmem>>, vector<1x1x128xf32>
    %81 = vector.shape_cast %80 : vector<1x1x128xf32> to vector<1x128xf32>
    %c1_69 = arith.constant 1 : index
    %c3_70 = arith.constant 3 : index
    %c0_71 = arith.constant 0 : index
    %82 = vector.load %arg3[%c1_69, %c3_70, %c0_71] : memref<3x8x256xf32, #tpu.memory_space<vmem>>, vector<1x1x128xf32>
    %83 = vector.shape_cast %82 : vector<1x1x128xf32> to vector<1x128xf32>
    %84 = arith.truncf %65 : vector<8x128xf32> to vector<8x128xbf16>
    %cst_72 = arith.constant dense<0.000000e+00> : vector<8x128xf32>
    %85 = tpu.matmul %84, %69, %cst_72 {dimension_numbers = #tpu.dot_dimension_numbers<[1], [0], [0], [1], [0, 0, 1, 1], [], []>} : vector<8x128xbf16>, vector<128x128xbf16>, vector<8x128xf32> -> vector<8x128xf32>
    %86 = vector.broadcast %77 : vector<1x128xf32> to vector<8x128xf32>
    %87 = arith.addf %85, %86 : vector<8x128xf32>
    %cst_73 = arith.constant 0.000000e+00 : f32
    %88 = vector.broadcast %cst_73 : f32 to vector<8x128xf32>
    %89 = arith.maximumf %87, %88 : vector<8x128xf32>
    %90 = arith.truncf %89 : vector<8x128xf32> to vector<8x128xbf16>
    %cst_74 = arith.constant dense<0.000000e+00> : vector<8x256xf32>
    %91 = tpu.matmul %90, %71, %cst_74 {dimension_numbers = #tpu.dot_dimension_numbers<[1], [0], [0], [1], [0, 0, 1, 1], [], []>} : vector<8x128xbf16>, vector<128x256xbf16>, vector<8x256xf32> -> vector<8x256xf32>
    %92 = vector.broadcast %79 : vector<1x256xf32> to vector<8x256xf32>
    %93 = arith.addf %91, %92 : vector<8x256xf32>
    %94 = vector.extract_strided_slice %93 {offsets = [0, 0], sizes = [8, 128], strides = [1, 1]} : vector<8x256xf32> to vector<8x128xf32>
    %95 = vector.extract_strided_slice %93 {offsets = [0, 128], sizes = [8, 128], strides = [1, 1]} : vector<8x256xf32> to vector<8x128xf32>
    %cst_75 = arith.constant 5.000000e-01 : f32
    %96 = vector.broadcast %cst_75 : f32 to vector<8x128xf32>
    %97 = arith.mulf %96, %95 : vector<8x128xf32>
    %98 = math.exp %97 : vector<8x128xf32>
    %99 = arith.mulf %98, %67 : vector<8x128xf32>
    %100 = arith.addf %94, %99 : vector<8x128xf32>
    %101 = arith.truncf %100 : vector<8x128xf32> to vector<8x128xbf16>
    %cst_76 = arith.constant dense<0.000000e+00> : vector<8x128xf32>
    %102 = tpu.matmul %101, %73, %cst_76 {dimension_numbers = #tpu.dot_dimension_numbers<[1], [0], [0], [1], [0, 0, 1, 1], [], []>} : vector<8x128xbf16>, vector<128x128xbf16>, vector<8x128xf32> -> vector<8x128xf32>
    %103 = vector.broadcast %81 : vector<1x128xf32> to vector<8x128xf32>
    %104 = arith.addf %102, %103 : vector<8x128xf32>
    %cst_77 = arith.constant 0.000000e+00 : f32
    %105 = vector.broadcast %cst_77 : f32 to vector<8x128xf32>
    %106 = arith.maximumf %104, %105 : vector<8x128xf32>
    %107 = arith.truncf %106 : vector<8x128xf32> to vector<8x128xbf16>
    %cst_78 = arith.constant dense<0.000000e+00> : vector<8x128xf32>
    %108 = tpu.matmul %107, %75, %cst_78 {dimension_numbers = #tpu.dot_dimension_numbers<[1], [0], [0], [1], [0, 0, 1, 1], [], []>} : vector<8x128xbf16>, vector<128x128xbf16>, vector<8x128xf32> -> vector<8x128xf32>
    %109 = vector.broadcast %83 : vector<1x128xf32> to vector<8x128xf32>
    %110 = arith.addf %108, %109 : vector<8x128xf32>
    %111 = arith.negf %110 : vector<8x128xf32>
    %112 = math.exp %111 : vector<8x128xf32>
    %cst_79 = arith.constant 1.000000e+00 : f32
    %113 = vector.broadcast %cst_79 : f32 to vector<8x128xf32>
    %114 = arith.addf %113, %112 : vector<8x128xf32>
    %115 = arith.divf %113, %114 : vector<8x128xf32>
    %c1_80 = arith.constant 1 : index
    %c0_81 = arith.constant 0 : index
    %c0_82 = arith.constant 0 : index
    %116 = vector.load %arg4[%c1_80, %c0_81, %c0_82] : memref<3x8x512xf32, #tpu.memory_space<vmem>>, vector<1x8x128xf32>
    %117 = vector.shape_cast %116 : vector<1x8x128xf32> to vector<8x128xf32>
    %118 = vector.shape_cast %115 : vector<8x128xf32> to vector<1x8x128xf32>
    tpu.vector_store %arg4[%c1_80, %c0_81, %c0_82], %118 {strides = array<i32>} : memref<3x8x512xf32, #tpu.memory_space<vmem>>, vector<1x8x128xf32>,
    %c1_83 = arith.constant 1 : index
    %c0_84 = arith.constant 0 : index
    %c128_85 = arith.constant 128 : index
    %119 = vector.load %arg4[%c1_83, %c0_84, %c128_85] : memref<3x8x512xf32, #tpu.memory_space<vmem>>, vector<1x8x128xf32>
    %120 = vector.shape_cast %119 : vector<1x8x128xf32> to vector<8x128xf32>
    %121 = vector.shape_cast %94 : vector<8x128xf32> to vector<1x8x128xf32>
    tpu.vector_store %arg4[%c1_83, %c0_84, %c128_85], %121 {strides = array<i32>} : memref<3x8x512xf32, #tpu.memory_space<vmem>>, vector<1x8x128xf32>,
    %c1_86 = arith.constant 1 : index
    %c0_87 = arith.constant 0 : index
    %c256_88 = arith.constant 256 : index
    %122 = vector.load %arg4[%c1_86, %c0_87, %c256_88] : memref<3x8x512xf32, #tpu.memory_space<vmem>>, vector<1x8x128xf32>
    %123 = vector.shape_cast %122 : vector<1x8x128xf32> to vector<8x128xf32>
    %124 = vector.shape_cast %95 : vector<8x128xf32> to vector<1x8x128xf32>
    tpu.vector_store %arg4[%c1_86, %c0_87, %c256_88], %124 {strides = array<i32>} : memref<3x8x512xf32, #tpu.memory_space<vmem>>, vector<1x8x128xf32>,
    %c1_89 = arith.constant 1 : index
    %c0_90 = arith.constant 0 : index
    %c384_91 = arith.constant 384 : index
    %125 = vector.load %arg4[%c1_89, %c0_90, %c384_91] : memref<3x8x512xf32, #tpu.memory_space<vmem>>, vector<1x8x128xf32>
    %126 = vector.shape_cast %125 : vector<1x8x128xf32> to vector<8x128xf32>
    %127 = vector.shape_cast %100 : vector<8x128xf32> to vector<1x8x128xf32>
    tpu.vector_store %arg4[%c1_89, %c0_90, %c384_91], %127 {strides = array<i32>} : memref<3x8x512xf32, #tpu.memory_space<vmem>>, vector<1x8x128xf32>,
    %c2_92 = arith.constant 2 : index
    %c0_93 = arith.constant 0 : index
    %c0_94 = arith.constant 0 : index
    %128 = vector.load %arg0[%c2_92, %c0_93, %c0_94] : memref<3x8x128xf32, #tpu.memory_space<vmem>>, vector<1x8x128xf32>
    %129 = vector.shape_cast %128 : vector<1x8x128xf32> to vector<8x128xf32>
    %c2_95 = arith.constant 2 : index
    %c0_96 = arith.constant 0 : index
    %c0_97 = arith.constant 0 : index
    %130 = vector.load %arg1[%c2_95, %c0_96, %c0_97] : memref<3x8x128xf32, #tpu.memory_space<vmem>>, vector<1x8x128xf32>
    %131 = vector.shape_cast %130 : vector<1x8x128xf32> to vector<8x128xf32>
    %c2_98 = arith.constant 2 : index
    %c0_99 = arith.constant 0 : index
    %c0_100 = arith.constant 0 : index
    %132 = vector.load %arg2[%c2_98, %c0_99, %c0_100] : memref<3x512x256xbf16, #tpu.memory_space<vmem>>, vector<1x128x128xbf16>
    %133 = vector.shape_cast %132 : vector<1x128x128xbf16> to vector<128x128xbf16>
    %c2_101 = arith.constant 2 : index
    %c128_102 = arith.constant 128 : index
    %c0_103 = arith.constant 0 : index
    %134 = vector.load %arg2[%c2_101, %c128_102, %c0_103] : memref<3x512x256xbf16, #tpu.memory_space<vmem>>, vector<1x128x256xbf16>
    %135 = vector.shape_cast %134 : vector<1x128x256xbf16> to vector<128x256xbf16>
    %c2_104 = arith.constant 2 : index
    %c256_105 = arith.constant 256 : index
    %c0_106 = arith.constant 0 : index
    %136 = vector.load %arg2[%c2_104, %c256_105, %c0_106] : memref<3x512x256xbf16, #tpu.memory_space<vmem>>, vector<1x128x128xbf16>
    %137 = vector.shape_cast %136 : vector<1x128x128xbf16> to vector<128x128xbf16>
    %c2_107 = arith.constant 2 : index
    %c384_108 = arith.constant 384 : index
    %c0_109 = arith.constant 0 : index
    %138 = vector.load %arg2[%c2_107, %c384_108, %c0_109] : memref<3x512x256xbf16, #tpu.memory_space<vmem>>, vector<1x128x128xbf16>
    %139 = vector.shape_cast %138 : vector<1x128x128xbf16> to vector<128x128xbf16>
    %c2_110 = arith.constant 2 : index
    %c0_111 = arith.constant 0 : index
    %c0_112 = arith.constant 0 : index
    %140 = vector.load %arg3[%c2_110, %c0_111, %c0_112] : memref<3x8x256xf32, #tpu.memory_space<vmem>>, vector<1x1x128xf32>
    %141 = vector.shape_cast %140 : vector<1x1x128xf32> to vector<1x128xf32>
    %c2_113 = arith.constant 2 : index
    %c1_114 = arith.constant 1 : index
    %c0_115 = arith.constant 0 : index
    %142 = vector.load %arg3[%c2_113, %c1_114, %c0_115] : memref<3x8x256xf32, #tpu.memory_space<vmem>>, vector<1x1x256xf32>
    %143 = vector.shape_cast %142 : vector<1x1x256xf32> to vector<1x256xf32>
    %c2_116 = arith.constant 2 : index
    %c2_117 = arith.constant 2 : index
    %c0_118 = arith.constant 0 : index
    %144 = vector.load %arg3[%c2_116, %c2_117, %c0_118] : memref<3x8x256xf32, #tpu.memory_space<vmem>>, vector<1x1x128xf32>
    %145 = vector.shape_cast %144 : vector<1x1x128xf32> to vector<1x128xf32>
    %c2_119 = arith.constant 2 : index
    %c3_120 = arith.constant 3 : index
    %c0_121 = arith.constant 0 : index
    %146 = vector.load %arg3[%c2_119, %c3_120, %c0_121] : memref<3x8x256xf32, #tpu.memory_space<vmem>>, vector<1x1x128xf32>
    %147 = vector.shape_cast %146 : vector<1x1x128xf32> to vector<1x128xf32>
    %148 = arith.truncf %129 : vector<8x128xf32> to vector<8x128xbf16>
    %cst_122 = arith.constant dense<0.000000e+00> : vector<8x128xf32>
    %149 = tpu.matmul %148, %133, %cst_122 {dimension_numbers = #tpu.dot_dimension_numbers<[1], [0], [0], [1], [0, 0, 1, 1], [], []>} : vector<8x128xbf16>, vector<128x128xbf16>, vector<8x128xf32> -> vector<8x128xf32>
    %150 = vector.broadcast %141 : vector<1x128xf32> to vector<8x128xf32>
    %151 = arith.addf %149, %150 : vector<8x128xf32>
    %cst_123 = arith.constant 0.000000e+00 : f32
    %152 = vector.broadcast %cst_123 : f32 to vector<8x128xf32>
    %153 = arith.maximumf %151, %152 : vector<8x128xf32>
    %154 = arith.truncf %153 : vector<8x128xf32> to vector<8x128xbf16>
    %cst_124 = arith.constant dense<0.000000e+00> : vector<8x256xf32>
    %155 = tpu.matmul %154, %135, %cst_124 {dimension_numbers = #tpu.dot_dimension_numbers<[1], [0], [0], [1], [0, 0, 1, 1], [], []>} : vector<8x128xbf16>, vector<128x256xbf16>, vector<8x256xf32> -> vector<8x256xf32>
    %156 = vector.broadcast %143 : vector<1x256xf32> to vector<8x256xf32>
    %157 = arith.addf %155, %156 : vector<8x256xf32>
    %158 = vector.extract_strided_slice %157 {offsets = [0, 0], sizes = [8, 128], strides = [1, 1]} : vector<8x256xf32> to vector<8x128xf32>
    %159 = vector.extract_strided_slice %157 {offsets = [0, 128], sizes = [8, 128], strides = [1, 1]} : vector<8x256xf32> to vector<8x128xf32>
    %cst_125 = arith.constant 5.000000e-01 : f32
    %160 = vector.broadcast %cst_125 : f32 to vector<8x128xf32>
    %161 = arith.mulf %160, %159 : vector<8x128xf32>
    %162 = math.exp %161 : vector<8x128xf32>
    %163 = arith.mulf %162, %131 : vector<8x128xf32>
    %164 = arith.addf %158, %163 : vector<8x128xf32>
    %165 = arith.truncf %164 : vector<8x128xf32> to vector<8x128xbf16>
    %cst_126 = arith.constant dense<0.000000e+00> : vector<8x128xf32>
    %166 = tpu.matmul %165, %137, %cst_126 {dimension_numbers = #tpu.dot_dimension_numbers<[1], [0], [0], [1], [0, 0, 1, 1], [], []>} : vector<8x128xbf16>, vector<128x128xbf16>, vector<8x128xf32> -> vector<8x128xf32>
    %167 = vector.broadcast %145 : vector<1x128xf32> to vector<8x128xf32>
    %168 = arith.addf %166, %167 : vector<8x128xf32>
    %cst_127 = arith.constant 0.000000e+00 : f32
    %169 = vector.broadcast %cst_127 : f32 to vector<8x128xf32>
    %170 = arith.maximumf %168, %169 : vector<8x128xf32>
    %171 = arith.truncf %170 : vector<8x128xf32> to vector<8x128xbf16>
    %cst_128 = arith.constant dense<0.000000e+00> : vector<8x128xf32>
    %172 = tpu.matmul %171, %139, %cst_128 {dimension_numbers = #tpu.dot_dimension_numbers<[1], [0], [0], [1], [0, 0, 1, 1], [], []>} : vector<8x128xbf16>, vector<128x128xbf16>, vector<8x128xf32> -> vector<8x128xf32>
    %173 = vector.broadcast %147 : vector<1x128xf32> to vector<8x128xf32>
    %174 = arith.addf %172, %173 : vector<8x128xf32>
    %175 = arith.negf %174 : vector<8x128xf32>
    %176 = math.exp %175 : vector<8x128xf32>
    %cst_129 = arith.constant 1.000000e+00 : f32
    %177 = vector.broadcast %cst_129 : f32 to vector<8x128xf32>
    %178 = arith.addf %177, %176 : vector<8x128xf32>
    %179 = arith.divf %177, %178 : vector<8x128xf32>
    %c2_130 = arith.constant 2 : index
    %c0_131 = arith.constant 0 : index
    %c0_132 = arith.constant 0 : index
    %180 = vector.load %arg4[%c2_130, %c0_131, %c0_132] : memref<3x8x512xf32, #tpu.memory_space<vmem>>, vector<1x8x128xf32>
    %181 = vector.shape_cast %180 : vector<1x8x128xf32> to vector<8x128xf32>
    %182 = vector.shape_cast %179 : vector<8x128xf32> to vector<1x8x128xf32>
    tpu.vector_store %arg4[%c2_130, %c0_131, %c0_132], %182 {strides = array<i32>} : memref<3x8x512xf32, #tpu.memory_space<vmem>>, vector<1x8x128xf32>,
    %c2_133 = arith.constant 2 : index
    %c0_134 = arith.constant 0 : index
    %c128_135 = arith.constant 128 : index
    %183 = vector.load %arg4[%c2_133, %c0_134, %c128_135] : memref<3x8x512xf32, #tpu.memory_space<vmem>>, vector<1x8x128xf32>
    %184 = vector.shape_cast %183 : vector<1x8x128xf32> to vector<8x128xf32>
    %185 = vector.shape_cast %158 : vector<8x128xf32> to vector<1x8x128xf32>
    tpu.vector_store %arg4[%c2_133, %c0_134, %c128_135], %185 {strides = array<i32>} : memref<3x8x512xf32, #tpu.memory_space<vmem>>, vector<1x8x128xf32>,
    %c2_136 = arith.constant 2 : index
    %c0_137 = arith.constant 0 : index
    %c256_138 = arith.constant 256 : index
    %186 = vector.load %arg4[%c2_136, %c0_137, %c256_138] : memref<3x8x512xf32, #tpu.memory_space<vmem>>, vector<1x8x128xf32>
    %187 = vector.shape_cast %186 : vector<1x8x128xf32> to vector<8x128xf32>
    %188 = vector.shape_cast %159 : vector<8x128xf32> to vector<1x8x128xf32>
    tpu.vector_store %arg4[%c2_136, %c0_137, %c256_138], %188 {strides = array<i32>} : memref<3x8x512xf32, #tpu.memory_space<vmem>>, vector<1x8x128xf32>,
    %c2_139 = arith.constant 2 : index
    %c0_140 = arith.constant 0 : index
    %c384_141 = arith.constant 384 : index
    %189 = vector.load %arg4[%c2_139, %c0_140, %c384_141] : memref<3x8x512xf32, #tpu.memory_space<vmem>>, vector<1x8x128xf32>
    %190 = vector.shape_cast %189 : vector<1x8x128xf32> to vector<8x128xf32>
    %191 = vector.shape_cast %164 : vector<8x128xf32> to vector<1x8x128xf32>
    tpu.vector_store %arg4[%c2_139, %c0_140, %c384_141], %191 {strides = array<i32>} : memref<3x8x512xf32, #tpu.memory_space<vmem>>, vector<1x8x128xf32>,
    return
  }
}

</mosaic_0001>

<llo_original>
// kernel: forward.1
$region0: #{forward.1}
  #allocation0 [shape = 'u32[]', space=smem, size = 0x4, offset = 0x4, fixed_abs, tag = 'smem constant byte address 0x4 - core index']
  #allocation1 [shape = 'u32[144,128]{1,0:T(1,128)}', space=vmem, size = 0x12000, scoped, tag = 'internal scratch']
  %s0 = inlined_call_operand.vmem [shape: f32[3,8,128], index: 0, kind: input, shape index: {}]
  %s1 = inlined_call_operand.vmem [shape: f32[3,8,128], index: 1, kind: input, shape index: {}]
  %s2 = inlined_call_operand.hbm [shape: bf16[3,512,256], index: 2, kind: input, shape index: {}]
  %s3 = inlined_call_operand.vmem [shape: f32[3,8,256], index: 3, kind: input, shape index: {}]
  %s4 = inlined_call_operand.vmem [shape: f32[3,8,512], index: 4, kind: output, shape index: {}]
  %s5 = sld [smem:[#allocation0]]
  $region30: #{forward.1} parent=0
    _
  %s7 = ssub.s32 1, %s5
  %s8 = scalar_select 0, %s7, %s5
  $region1: #{forward.1} parent=0
    #allocation2 [shape = 'u8[786432]{0}', space=vmem, size = 0xc0000, scoped, tag = 'input window, operand 2, single buffered']
    #allocation3 [shape = 's32[1]{0}', space=sflag, size = 0x4, scoped, tag = 'scoped memory for forward.1']
    %9 = vsyncpa [#allocation3], 0
    // Predicated region
    $region2: #{forward.1} parent=1 // pred_check
      _
    $region3: #{forward.1} parent=1 // pred_check_branch
      %11 = sbr.rel (0) target = $region5
    $region4: #{forward.1} parent=1 // pred_region
      _
    $region5: #{forward.1} parent=1 // pred_fallthru
      _
    // Predicated region
    $region6: #{forward.1} parent=1 // pred_check
      _
    $region7: #{forward.1} parent=1 // pred_check_branch
      %13 = sbr.rel (0) target = $region9
    $region8: #{forward.1} parent=1 // pred_region
      _
    $region9: #{forward.1} parent=1 // pred_fallthru
      _
    // Predicated region
    $region10: #{forward.1} parent=1 // pred_check
      _
    $region11: #{forward.1} parent=1 // pred_check_branch
      %15 = sbr.rel (0) target = $region13
    $region12: #{forward.1} parent=1 // pred_region
      %s17 = ssub.s32 24576, 24576
      %18 = vsyncadd [#allocation3], %s17
      %s19 = sshll.u32 [#allocation2], 4
      %s20 = int_to_ptr.vmem [resolvable:$true] %s19
      %25 = dma.hbm_to_vmem [thread:$0]  %s2, 24576, %s20, [#allocation3], 128, 128, 8
    $region13: #{forward.1} parent=1 // pred_fallthru
      _
    // Predicated region
    $region14: #{forward.1} parent=1 // pred_check
      _
    $region15: #{forward.1} parent=1 // pred_check_branch
      %27 = sbr.rel (0) target = $region17
    $region16: #{forward.1} parent=1 // pred_region
      _
    $region17: #{forward.1} parent=1 // pred_fallthru
      _
    // Predicated region
    $region18: #{forward.1} parent=1 // pred_check
      _
    $region19: #{forward.1} parent=1 // pred_check_branch
      %29 = sbr.rel (0) target = $region21
    $region20: #{forward.1} parent=1 // pred_region
      %30 = dma.done [#allocation3], 24576
    $region21: #{forward.1} parent=1 // pred_fallthru
      _
    %v32 = vld [vmem:[%s0] sm:$0xff]
    %v33 = vld [vmem:[%s1] sm:$0xff]
    %v34 = vld [vmem:[#allocation2] sm:$0xf]
    %v35 = vld [vmem:[#allocation2 + $0x8] sm:$0xf]
    %v36 = vld [vmem:[#allocation2 + $0x10] sm:$0xf]
    %v37 = vld [vmem:[#allocation2 + $0x18] sm:$0xf]
    %v38 = vld [vmem:[#allocation2 + $0x20] sm:$0xf]
    %v39 = vld [vmem:[#allocation2 + $0x28] sm:$0xf]
    %v40 = vld [vmem:[#allocation2 + $0x30] sm:$0xf]
    %v41 = vld [vmem:[#allocation2 + $0x38] sm:$0xf]
    %v42 = vld [vmem:[#allocation2 + $0x40] sm:$0xf]
    %v43 = vld [vmem:[#allocation2 + $0x48] sm:$0xf]
    %v44 = vld [vmem:[#allocation2 + $0x50] sm:$0xf]
    %v45 = vld [vmem:[#allocation2 + $0x58] sm:$0xf]
    %v46 = vld [vmem:[#allocation2 + $0x60] sm:$0xf]
    %v47 = vld [vmem:[#allocation2 + $0x68] sm:$0xf]
    %v48 = vld [vmem:[#allocation2 + $0x70] sm:$0xf]
    %v49 = vld [vmem:[#allocation2 + $0x78] sm:$0xf]
    %v50 = vld [vmem:[#allocation2 + $0x80] sm:$0xff]
    %v51 = vld [vmem:[#allocation2 + $0x88] sm:$0xff]
    %v52 = vld [vmem:[#allocation2 + $0x90] sm:$0xff]
    %v53 = vld [vmem:[#allocation2 + $0x98] sm:$0xff]
    %v54 = vld [vmem:[#allocation2 + $0xa0] sm:$0xff]
    %v55 = vld [vmem:[#allocation2 + $0xa8] sm:$0xff]
    %v56 = vld [vmem:[#allocation2 + $0xb0] sm:$0xff]
    %v57 = vld [vmem:[#allocation2 + $0xb8] sm:$0xff]
    %v58 = vld [vmem:[#allocation2 + $0xc0] sm:$0xff]
    %v59 = vld [vmem:[#allocation2 + $0xc8] sm:$0xff]
    %v60 = vld [vmem:[#allocation2 + $0xd0] sm:$0xff]
    %v61 = vld [vmem:[#allocation2 + $0xd8] sm:$0xff]
    %v62 = vld [vmem:[#allocation2 + $0xe0] sm:$0xff]
    %v63 = vld [vmem:[#allocation2 + $0xe8] sm:$0xff]
    %v64 = vld [vmem:[#allocation2 + $0xf0] sm:$0xff]
    %v65 = vld [vmem:[#allocation2 + $0xf8] sm:$0xff]
    %v66 = vld [vmem:[#allocation2 + $0x100] sm:$0xf]
    %v67 = vld [vmem:[#allocation2 + $0x108] sm:$0xf]
    %v68 = vld [vmem:[#allocation2 + $0x110] sm:$0xf]
    %v69 = vld [vmem:[#allocation2 + $0x118] sm:$0xf]
    %v70 = vld [vmem:[#allocation2 + $0x120] sm:$0xf]
    %v71 = vld [vmem:[#allocation2 + $0x128] sm:$0xf]
    %v72 = vld [vmem:[#allocation2 + $0x130] sm:$0xf]
    %v73 = vld [vmem:[#allocation2 + $0x138] sm:$0xf]
    %v74 = vld [vmem:[#allocation2 + $0x140] sm:$0xf]
    %v75 = vld [vmem:[#allocation2 + $0x148] sm:$0xf]
    %v76 = vld [vmem:[#allocation2 + $0x150] sm:$0xf]
    %v77 = vld [vmem:[#allocation2 + $0x158] sm:$0xf]
    %v78 = vld [vmem:[#allocation2 + $0x160] sm:$0xf]
    %v79 = vld [vmem:[#allocation2 + $0x168] sm:$0xf]
    %v80 = vld [vmem:[#allocation2 + $0x170] sm:$0xf]
    %v81 = vld [vmem:[#allocation2 + $0x178] sm:$0xf]
    %v82 = vld [vmem:[#allocation2 + $0x180] sm:$0xf]
    %v83 = vld [vmem:[#allocation2 + $0x188] sm:$0xf]
    %v84 = vld [vmem:[#allocation2 + $0x190] sm:$0xf]
    %v85 = vld [vmem:[#allocation2 + $0x198] sm:$0xf]
    %v86 = vld [vmem:[#allocation2 + $0x1a0] sm:$0xf]
    %v87 = vld [vmem:[#allocation2 + $0x1a8] sm:$0xf]
    %v88 = vld [vmem:[#allocation2 + $0x1b0] sm:$0xf]
    %v89 = vld [vmem:[#allocation2 + $0x1b8] sm:$0xf]
    %v90 = vld [vmem:[#allocation2 + $0x1c0] sm:$0xf]
    %v91 = vld [vmem:[#allocation2 + $0x1c8] sm:$0xf]
    %v92 = vld [vmem:[#allocation2 + $0x1d0] sm:$0xf]
    %v93 = vld [vmem:[#allocation2 + $0x1d8] sm:$0xf]
    %v94 = vld [vmem:[#allocation2 + $0x1e0] sm:$0xf]
    %v95 = vld [vmem:[#allocation2 + $0x1e8] sm:$0xf]
    %v96 = vld [vmem:[#allocation2 + $0x1f0] sm:$0xf]
    %v97 = vld [vmem:[#allocation2 + $0x1f8] sm:$0xf]
    %v98 = vld [vmem:[%s3] ss:$0 sm:$0xff]
    %s99 = scalar_lea.vmem %s3, 1
    %v100 = vld [vmem:[%s99] ss:$8 sm:$0x3]
    %v101 = vld [vmem:[%s3 + $0x2] ss:$0 sm:$0xff]
    %v102 = vld [vmem:[%s3 + $0x3] ss:$0 sm:$0xff]
    %v103 = vpack.c.bf16 %v32, %v32
    %v120 = vunpack.c.l.b16 %v34
    %v121 = vunpack.c.l.b16 %v35
    %v122 = vunpack.c.l.b16 %v36
    %v123 = vunpack.c.l.b16 %v37
    %v124 = vunpack.c.l.b16 %v38
    %v125 = vunpack.c.l.b16 %v39
    %v126 = vunpack.c.l.b16 %v40
    %v127 = vunpack.c.l.b16 %v41
    %v128 = vunpack.c.l.b16 %v42
    %v129 = vunpack.c.l.b16 %v43
    %v130 = vunpack.c.l.b16 %v44
    %v131 = vunpack.c.l.b16 %v45
    %v132 = vunpack.c.l.b16 %v46
    %v133 = vunpack.c.l.b16 %v47
    %v134 = vunpack.c.l.b16 %v48
    %v135 = vunpack.c.l.b16 %v49
    %v136 = vpack.c.b16 %v121, %v120
    %v137 = vpack.c.b16 %v123, %v122
    %v138 = vpack.c.b16 %v125, %v124
    %v139 = vpack.c.b16 %v127, %v126
    %v140 = vpack.c.b16 %v129, %v128
    %v141 = vpack.c.b16 %v131, %v130
    %v142 = vpack.c.b16 %v133, %v132
    %v143 = vpack.c.b16 %v135, %v134
    %152 = vmatprep.subr.bf16.mxu0 0
    %153 = vmatpush1.bf16.msra.mxu0 %v143
    %154 = vmatprep.subr.bf16.mxu0 0
    %155 = vmatpush1.bf16.msra.mxu0 %v142
    %156 = vmatprep.subr.bf16.mxu0 0
    %157 = vmatpush1.bf16.msra.mxu0 %v141
    %158 = vmatprep.subr.bf16.mxu0 0
    %159 = vmatpush1.bf16.msra.mxu0 %v140
    %160 = vmatprep.subr.bf16.mxu0 0
    %161 = vmatpush1.bf16.msra.mxu0 %v139
    %162 = vmatprep.subr.bf16.mxu0 0
    %163 = vmatpush1.bf16.msra.mxu0 %v138
    %164 = vmatprep.subr.bf16.mxu0 0
    %165 = vmatpush1.bf16.msra.mxu0 %v137
    %166 = vmatprep.subr.bf16.mxu0 0
    %167 = vmatpush1.bf16.msra.mxu0 %v136
    %168 = vmatprep.subr.bf16.mxu0 0
    %169 = vmatpush2.bf16.msra.mxu0 0
    %170 = vmatprep.subr.bf16.mxu0 0
    %171 = vmatpush2.bf16.msra.mxu0 0
    %172 = vmatprep.subr.bf16.mxu0 0
    %173 = vmatpush2.bf16.msra.mxu0 0
    %174 = vmatprep.subr.bf16.mxu0 0
    %175 = vmatpush2.bf16.msra.mxu0 0
    %176 = vmatprep.subr.bf16.mxu0 0
    %177 = vmatpush2.bf16.msra.mxu0 0
    %178 = vmatprep.subr.bf16.mxu0 0
    %179 = vmatpush2.bf16.msra.mxu0 0
    %180 = vmatprep.subr.bf16.mxu0 0
    %181 = vmatpush2.bf16.msra.mxu0 0
    %182 = vmatprep.subr.bf16.mxu0 0
    %183 = vmatpush2.bf16.msra.mxu0 0
    %184 = vmatprep.mubr.bf16.mxu0 0
    %185 = vmatmul.mubr.bf16.gmra.mxu0 %v103
    %v186 = vpop.f32.mrf.mxu0
    %v187 = vadd.f32 %v98, %v186
    %v188 = vpop.f32.mrf.mxu0
    %v189 = vpop.f32.mrf.mxu0
    %v190 = vpop.f32.mrf.mxu0
    %191 = vdwg.mxu0
    %v192 = vmax.f32 %v187, 0.0
    %v193 = vpack.c.bf16 %v192, %v192
    %v195 = vlaneseq
    %v196 = vshrl.u32 %v195, 7
    %v197 = vsub.s32 0, %v196
    %v198 = vrot.slane %v100, %v197
    %v199 = vlaneseq
    %v200 = vshrl.u32 %v199, 7
    %v201 = vsub.s32 1, %v200
    %v202 = vrot.slane %v100, %v201
    %v221 = vunpack.c.l.b16 %v50
    %v222 = vunpack.c.h.b16 %v50
    %v223 = vunpack.c.l.b16 %v51
    %v224 = vunpack.c.h.b16 %v51
    %v225 = vunpack.c.l.b16 %v52
    %v226 = vunpack.c.h.b16 %v52
    %v227 = vunpack.c.l.b16 %v53
    %v228 = vunpack.c.h.b16 %v53
    %v229 = vunpack.c.l.b16 %v54
    %v230 = vunpack.c.h.b16 %v54
    %v231 = vunpack.c.l.b16 %v55
    %v232 = vunpack.c.h.b16 %v55
    %v233 = vunpack.c.l.b16 %v56
    %v234 = vunpack.c.h.b16 %v56
    %v235 = vunpack.c.l.b16 %v57
    %v236 = vunpack.c.h.b16 %v57
    %v237 = vunpack.c.l.b16 %v58
    %v238 = vunpack.c.h.b16 %v58
    %v239 = vunpack.c.l.b16 %v59
    %v240 = vunpack.c.h.b16 %v59
    %v241 = vunpack.c.l.b16 %v60
    %v242 = vunpack.c.h.b16 %v60
    %v243 = vunpack.c.l.b16 %v61
    %v244 = vunpack.c.h.b16 %v61
    %v245 = vunpack.c.l.b16 %v62
    %v246 = vunpack.c.h.b16 %v62
    %v247 = vunpack.c.l.b16 %v63
    %v248 = vunpack.c.h.b16 %v63
    %v249 = vunpack.c.l.b16 %v64
    %v250 = vunpack.c.h.b16 %v64
    %v251 = vunpack.c.l.b16 %v65
    %v252 = vunpack.c.h.b16 %v65
    %v253 = vpack.c.b16 %v223, %v221
    %v254 = vpack.c.b16 %v224, %v222
    %v255 = vpack.c.b16 %v227, %v225
    %v256 = vpack.c.b16 %v228, %v226
    %v257 = vpack.c.b16 %v231, %v229
    %v258 = vpack.c.b16 %v232, %v230
    %v259 = vpack.c.b16 %v235, %v233
    %v260 = vpack.c.b16 %v236, %v234
    %v261 = vpack.c.b16 %v239, %v237
    %v262 = vpack.c.b16 %v240, %v238
    %v263 = vpack.c.b16 %v243, %v241
    %v264 = vpack.c.b16 %v244, %v242
    %v265 = vpack.c.b16 %v247, %v245
    %v266 = vpack.c.b16 %v248, %v246
    %v267 = vpack.c.b16 %v251, %v249
    %v268 = vpack.c.b16 %v252, %v250
    %285 = vmatprep.subr.bf16.mxu0 %v268
    %286 = vmatpush1.bf16.msra.mxu0 %v267
    %287 = vmatprep.subr.bf16.mxu0 %v266
    %288 = vmatpush1.bf16.msra.mxu0 %v265
    %289 = vmatprep.subr.bf16.mxu0 %v264
    %290 = vmatpush1.bf16.msra.mxu0 %v263
    %291 = vmatprep.subr.bf16.mxu0 %v262
    %292 = vmatpush1.bf16.msra.mxu0 %v261
    %293 = vmatprep.subr.bf16.mxu0 %v260
    %294 = vmatpush1.bf16.msra.mxu0 %v259
    %295 = vmatprep.subr.bf16.mxu0 %v258
    %296 = vmatpush1.bf16.msra.mxu0 %v257
    %297 = vmatprep.subr.bf16.mxu0 %v256
    %298 = vmatpush1.bf16.msra.mxu0 %v255
    %299 = vmatprep.subr.bf16.mxu0 %v254
    %300 = vmatpush1.bf16.msra.mxu0 %v253
    %301 = vmatprep.subr.bf16.mxu0 0
    %302 = vmatpush2.bf16.msra.mxu0 0
    %303 = vmatprep.subr.bf16.mxu0 0
    %304 = vmatpush2.bf16.msra.mxu0 0
    %305 = vmatprep.subr.bf16.mxu0 0
    %306 = vmatpush2.bf16.msra.mxu0 0
    %307 = vmatprep.subr.bf16.mxu0 0
    %308 = vmatpush2.bf16.msra.mxu0 0
    %309 = vmatprep.subr.bf16.mxu0 0
    %310 = vmatpush2.bf16.msra.mxu0 0
    %311 = vmatprep.subr.bf16.mxu0 0
    %312 = vmatpush2.bf16.msra.mxu0 0
    %313 = vmatprep.subr.bf16.mxu0 0
    %314 = vmatpush2.bf16.msra.mxu0 0
    %315 = vmatprep.subr.bf16.mxu0 0
    %316 = vmatpush2.bf16.msra.mxu0 0
    %317 = vmatprep.mubr.bf16.mxu0 0
    %318 = vmatmul.mubr.bf16.gmra.mxu0 %v193
    %v319 = vpop.f32.mrf.mxu0
    %v320 = vadd.f32 %v198, %v319
    %v321 = vpop.f32.mrf.mxu0
    %v322 = vadd.f32 %v202, %v321
    %v323 = vpop.f32.mrf.mxu0
    %v324 = vpop.f32.mrf.mxu0
    %325 = vdwg.mxu0
    %v326 = vmul.f32 %v322, 0.5
    %v327 = vmul.f32 %v326, 1.442695
    %v328 = vpow.pop %v327
    %v329 = vmul.f32 %v328, %v33
    %v330 = vadd.f32 %v320, %v329
    %v331 = vpack.c.bf16 %v330, %v330
    %v348 = vunpack.c.l.b16 %v66
    %v349 = vunpack.c.l.b16 %v67
    %v350 = vunpack.c.l.b16 %v68
    %v351 = vunpack.c.l.b16 %v69
    %v352 = vunpack.c.l.b16 %v70
    %v353 = vunpack.c.l.b16 %v71
    %v354 = vunpack.c.l.b16 %v72
    %v355 = vunpack.c.l.b16 %v73
    %v356 = vunpack.c.l.b16 %v74
    %v357 = vunpack.c.l.b16 %v75
    %v358 = vunpack.c.l.b16 %v76
    %v359 = vunpack.c.l.b16 %v77
    %v360 = vunpack.c.l.b16 %v78
    %v361 = vunpack.c.l.b16 %v79
    %v362 = vunpack.c.l.b16 %v80
    %v363 = vunpack.c.l.b16 %v81
    %v364 = vpack.c.b16 %v349, %v348
    %v365 = vpack.c.b16 %v351, %v350
    %v366 = vpack.c.b16 %v353, %v352
    %v367 = vpack.c.b16 %v355, %v354
    %v368 = vpack.c.b16 %v357, %v356
    %v369 = vpack.c.b16 %v359, %v358
    %v370 = vpack.c.b16 %v361, %v360
    %v371 = vpack.c.b16 %v363, %v362
    %380 = vmatprep.subr.bf16.mxu0 0
    %381 = vmatpush1.bf16.msra.mxu0 %v371
    %382 = vmatprep.subr.bf16.mxu0 0
    %383 = vmatpush1.bf16.msra.mxu0 %v370
    %384 = vmatprep.subr.bf16.mxu0 0
    %385 = vmatpush1.bf16.msra.mxu0 %v369
    %386 = vmatprep.subr.bf16.mxu0 0
    %387 = vmatpush1.bf16.msra.mxu0 %v368
    %388 = vmatprep.subr.bf16.mxu0 0
    %389 = vmatpush1.bf16.msra.mxu0 %v367
    %390 = vmatprep.subr.bf16.mxu0 0
    %391 = vmatpush1.bf16.msra.mxu0 %v366
    %392 = vmatprep.subr.bf16.mxu0 0
    %393 = vmatpush1.bf16.msra.mxu0 %v365
    %394 = vmatprep.subr.bf16.mxu0 0
    %395 = vmatpush1.bf16.msra.mxu0 %v364
    %396 = vmatprep.subr.bf16.mxu0 0
    %397 = vmatpush2.bf16.msra.mxu0 0
    %398 = vmatprep.subr.bf16.mxu0 0
    %399 = vmatpush2.bf16.msra.mxu0 0
    %400 = vmatprep.subr.bf16.mxu0 0
    %401 = vmatpush2.bf16.msra.mxu0 0
    %402 = vmatprep.subr.bf16.mxu0 0
    %403 = vmatpush2.bf16.msra.mxu0 0
    %404 = vmatprep.subr.bf16.mxu0 0
    %405 = vmatpush2.bf16.msra.mxu0 0
    %406 = vmatprep.subr.bf16.mxu0 0
    %407 = vmatpush2.bf16.msra.mxu0 0
    %408 = vmatprep.subr.bf16.mxu0 0
    %409 = vmatpush2.bf16.msra.mxu0 0
    %410 = vmatprep.subr.bf16.mxu0 0
    %411 = vmatpush2.bf16.msra.mxu0 0
    %412 = vmatprep.mubr.bf16.mxu0 0
    %413 = vmatmul.mubr.bf16.gmra.mxu0 %v331
    %v414 = vpop.f32.mrf.mxu0
    %v415 = vadd.f32 %v101, %v414
    %v416 = vpop.f32.mrf.mxu0
    %v417 = vpop.f32.mrf.mxu0
    %v418 = vpop.f32.mrf.mxu0
    %419 = vdwg.mxu0
    %v420 = vmax.f32 %v415, 0.0
    %v421 = vpack.c.bf16 %v420, %v420
    %v438 = vunpack.c.l.b16 %v82
    %v439 = vunpack.c.l.b16 %v83
    %v440 = vunpack.c.l.b16 %v84
    %v441 = vunpack.c.l.b16 %v85
    %v442 = vunpack.c.l.b16 %v86
    %v443 = vunpack.c.l.b16 %v87
    %v444 = vunpack.c.l.b16 %v88
    %v445 = vunpack.c.l.b16 %v89
    %v446 = vunpack.c.l.b16 %v90
    %v447 = vunpack.c.l.b16 %v91
    %v448 = vunpack.c.l.b16 %v92
    %v449 = vunpack.c.l.b16 %v93
    %v450 = vunpack.c.l.b16 %v94
    %v451 = vunpack.c.l.b16 %v95
    %v452 = vunpack.c.l.b16 %v96
    %v453 = vunpack.c.l.b16 %v97
    %v454 = vpack.c.b16 %v439, %v438
    %v455 = vpack.c.b16 %v441, %v440
    %v456 = vpack.c.b16 %v443, %v442
    %v457 = vpack.c.b16 %v445, %v444
    %v458 = vpack.c.b16 %v447, %v446
    %v459 = vpack.c.b16 %v449, %v448
    %v460 = vpack.c.b16 %v451, %v450
    %v461 = vpack.c.b16 %v453, %v452
    %470 = vmatprep.subr.bf16.mxu0 0
    %471 = vmatpush1.bf16.msra.mxu0 %v461
    %472 = vmatprep.subr.bf16.mxu0 0
    %473 = vmatpush1.bf16.msra.mxu0 %v460
    %474 = vmatprep.subr.bf16.mxu0 0
    %475 = vmatpush1.bf16.msra.mxu0 %v459
    %476 = vmatprep.subr.bf16.mxu0 0
    %477 = vmatpush1.bf16.msra.mxu0 %v458
    %478 = vmatprep.subr.bf16.mxu0 0
    %479 = vmatpush1.bf16.msra.mxu0 %v457
    %480 = vmatprep.subr.bf16.mxu0 0
    %481 = vmatpush1.bf16.msra.mxu0 %v456
    %482 = vmatprep.subr.bf16.mxu0 0
    %483 = vmatpush1.bf16.msra.mxu0 %v455
    %484 = vmatprep.subr.bf16.mxu0 0
    %485 = vmatpush1.bf16.msra.mxu0 %v454
    %486 = vmatprep.subr.bf16.mxu0 0
    %487 = vmatpush2.bf16.msra.mxu0 0
    %488 = vmatprep.subr.bf16.mxu0 0
    %489 = vmatpush2.bf16.msra.mxu0 0
    %490 = vmatprep.subr.bf16.mxu0 0
    %491 = vmatpush2.bf16.msra.mxu0 0
    %492 = vmatprep.subr.bf16.mxu0 0
    %493 = vmatpush2.bf16.msra.mxu0 0
    %494 = vmatprep.subr.bf16.mxu0 0
    %495 = vmatpush2.bf16.msra.mxu0 0
    %496 = vmatprep.subr.bf16.mxu0 0
    %497 = vmatpush2.bf16.msra.mxu0 0
    %498 = vmatprep.subr.bf16.mxu0 0
    %499 = vmatpush2.bf16.msra.mxu0 0
    %500 = vmatprep.subr.bf16.mxu0 0
    %501 = vmatpush2.bf16.msra.mxu0 0
    %502 = vmatprep.mubr.bf16.mxu0 0
    %503 = vmatmul.mubr.bf16.gmra.mxu0 %v421
    %v504 = vpop.f32.mrf.mxu0
    %v505 = vadd.f32 %v102, %v504
    %v506 = vpop.f32.mrf.mxu0
    %v507 = vpop.f32.mrf.mxu0
    %v508 = vpop.f32.mrf.mxu0
    %509 = vdwg.mxu0
    %v510 = vxor.u32 %v505, 2147483648
    %v511 = vmul.f32 %v510, 1.442695
    %v512 = vpow.pop %v511
    %v513 = vadd.f32 %v512, 1.0
    %v514 = vrcp.pop %v513
    %v515 = vmul.f32 1.0, %v514
    %516 = vst [vmem:[%s4] sm:$0xff] %v515
    %517 = vst [vmem:[%s4 + $0x8] sm:$0xff] %v320
    %518 = vst [vmem:[%s4 + $0x10] sm:$0xff] %v322
    %519 = vst [vmem:[%s4 + $0x18] sm:$0xff] %v330
    %s520 = scalar_lea.vmem %s0, 8
    %v521 = vld [vmem:[%s520] sm:$0xff]
    %s522 = scalar_lea.vmem %s1, 8
    %v523 = vld [vmem:[%s522] sm:$0xff]
    %s524 = scalar_lea.vmem [#allocation2], 512
    %v525 = vld [vmem:[%s524] sm:$0xf]
    %v526 = vld [vmem:[%s524 + $0x8] sm:$0xf]
    %v527 = vld [vmem:[%s524 + $0x10] sm:$0xf]
    %v528 = vld [vmem:[%s524 + $0x18] sm:$0xf]
    %v529 = vld [vmem:[%s524 + $0x20] sm:$0xf]
    %v530 = vld [vmem:[%s524 + $0x28] sm:$0xf]
    %v531 = vld [vmem:[%s524 + $0x30] sm:$0xf]
    %v532 = vld [vmem:[%s524 + $0x38] sm:$0xf]
    %v533 = vld [vmem:[%s524 + $0x40] sm:$0xf]
    %v534 = vld [vmem:[%s524 + $0x48] sm:$0xf]
    %v535 = vld [vmem:[%s524 + $0x50] sm:$0xf]
    %v536 = vld [vmem:[%s524 + $0x58] sm:$0xf]
    %v537 = vld [vmem:[%s524 + $0x60] sm:$0xf]
    %v538 = vld [vmem:[%s524 + $0x68] sm:$0xf]
    %v539 = vld [vmem:[%s524 + $0x70] sm:$0xf]
    %v540 = vld [vmem:[%s524 + $0x78] sm:$0xf]
    %v541 = vld [vmem:[%s524 + $0x80] sm:$0xff]
    %v542 = vld [vmem:[%s524 + $0x88] sm:$0xff]
    %v543 = vld [vmem:[%s524 + $0x90] sm:$0xff]
    %v544 = vld [vmem:[%s524 + $0x98] sm:$0xff]
    %v545 = vld [vmem:[%s524 + $0xa0] sm:$0xff]
    %v546 = vld [vmem:[%s524 + $0xa8] sm:$0xff]
    %v547 = vld [vmem:[%s524 + $0xb0] sm:$0xff]
    %v548 = vld [vmem:[%s524 + $0xb8] sm:$0xff]
    %v549 = vld [vmem:[%s524 + $0xc0] sm:$0xff]
    %v550 = vld [vmem:[%s524 + $0xc8] sm:$0xff]
    %v551 = vld [vmem:[%s524 + $0xd0] sm:$0xff]
    %v552 = vld [vmem:[%s524 + $0xd8] sm:$0xff]
    %v553 = vld [vmem:[%s524 + $0xe0] sm:$0xff]
    %v554 = vld [vmem:[%s524 + $0xe8] sm:$0xff]
    %v555 = vld [vmem:[%s524 + $0xf0] sm:$0xff]
    %v556 = vld [vmem:[%s524 + $0xf8] sm:$0xff]
    %v557 = vld [vmem:[%s524 + $0x100] sm:$0xf]
    %v558 = vld [vmem:[%s524 + $0x108] sm:$0xf]
    %v559 = vld [vmem:[%s524 + $0x110] sm:$0xf]
    %v560 = vld [vmem:[%s524 + $0x118] sm:$0xf]
    %v561 = vld [vmem:[%s524 + $0x120] sm:$0xf]
    %v562 = vld [vmem:[%s524 + $0x128] sm:$0xf]
    %v563 = vld [vmem:[%s524 + $0x130] sm:$0xf]
    %v564 = vld [vmem:[%s524 + $0x138] sm:$0xf]
    %v565 = vld [vmem:[%s524 + $0x140] sm:$0xf]
    %v566 = vld [vmem:[%s524 + $0x148] sm:$0xf]
    %v567 = vld [vmem:[%s524 + $0x150] sm:$0xf]
    %v568 = vld [vmem:[%s524 + $0x158] sm:$0xf]
    %v569 = vld [vmem:[%s524 + $0x160] sm:$0xf]
    %v570 = vld [vmem:[%s524 + $0x168] sm:$0xf]
    %v571 = vld [vmem:[%s524 + $0x170] sm:$0xf]
    %v572 = vld [vmem:[%s524 + $0x178] sm:$0xf]
    %v573 = vld [vmem:[%s524 + $0x180] sm:$0xf]
    %v574 = vld [vmem:[%s524 + $0x188] sm:$0xf]
    %v575 = vld [vmem:[%s524 + $0x190] sm:$0xf]
    %v576 = vld [vmem:[%s524 + $0x198] sm:$0xf]
    %v577 = vld [vmem:[%s524 + $0x1a0] sm:$0xf]
    %v578 = vld [vmem:[%s524 + $0x1a8] sm:$0xf]
    %v579 = vld [vmem:[%s524 + $0x1b0] sm:$0xf]
    %v580 = vld [vmem:[%s524 + $0x1b8] sm:$0xf]
    %v581 = vld [vmem:[%s524 + $0x1c0] sm:$0xf]
    %v582 = vld [vmem:[%s524 + $0x1c8] sm:$0xf]
    %v583 = vld [vmem:[%s524 + $0x1d0] sm:$0xf]
    %v584 = vld [vmem:[%s524 + $0x1d8] sm:$0xf]
    %v585 = vld [vmem:[%s524 + $0x1e0] sm:$0xf]
    %v586 = vld [vmem:[%s524 + $0x1e8] sm:$0xf]
    %v587 = vld [vmem:[%s524 + $0x1f0] sm:$0xf]
    %v588 = vld [vmem:[%s524 + $0x1f8] sm:$0xf]
    %s589 = scalar_lea.vmem %s3, 16
    %v590 = vld [vmem:[%s589] ss:$0 sm:$0xff]
    %s591 = scalar_lea.vmem %s589, 1
    %v592 = vld [vmem:[%s591] ss:$8 sm:$0x3]
    %v593 = vld [vmem:[%s589 + $0x2] ss:$0 sm:$0xff]
    %v594 = vld [vmem:[%s589 + $0x3] ss:$0 sm:$0xff]
    %v595 = vpack.c.bf16 %v521, %v521
    %v612 = vunpack.c.l.b16 %v525
    %v613 = vunpack.c.l.b16 %v526
    %v614 = vunpack.c.l.b16 %v527
    %v615 = vunpack.c.l.b16 %v528
    %v616 = vunpack.c.l.b16 %v529
    %v617 = vunpack.c.l.b16 %v530
    %v618 = vunpack.c.l.b16 %v531
    %v619 = vunpack.c.l.b16 %v532
    %v620 = vunpack.c.l.b16 %v533
    %v621 = vunpack.c.l.b16 %v534
    %v622 = vunpack.c.l.b16 %v535
    %v623 = vunpack.c.l.b16 %v536
    %v624 = vunpack.c.l.b16 %v537
    %v625 = vunpack.c.l.b16 %v538
    %v626 = vunpack.c.l.b16 %v539
    %v627 = vunpack.c.l.b16 %v540
    %v628 = vpack.c.b16 %v613, %v612
    %v629 = vpack.c.b16 %v615, %v614
    %v630 = vpack.c.b16 %v617, %v616
    %v631 = vpack.c.b16 %v619, %v618
    %v632 = vpack.c.b16 %v621, %v620
    %v633 = vpack.c.b16 %v623, %v622
    %v634 = vpack.c.b16 %v625, %v624
    %v635 = vpack.c.b16 %v627, %v626
    %644 = vmatprep.subr.bf16.mxu0 0
    %645 = vmatpush1.bf16.msra.mxu0 %v635
    %646 = vmatprep.subr.bf16.mxu0 0
    %647 = vmatpush1.bf16.msra.mxu0 %v634
    %648 = vmatprep.subr.bf16.mxu0 0
    %649 = vmatpush1.bf16.msra.mxu0 %v633
    %650 = vmatprep.subr.bf16.mxu0 0
    %651 = vmatpush1.bf16.msra.mxu0 %v632
    %652 = vmatprep.subr.bf16.mxu0 0
    %653 = vmatpush1.bf16.msra.mxu0 %v631
    %654 = vmatprep.subr.bf16.mxu0 0
    %655 = vmatpush1.bf16.msra.mxu0 %v630
    %656 = vmatprep.subr.bf16.mxu0 0
    %657 = vmatpush1.bf16.msra.mxu0 %v629
    %658 = vmatprep.subr.bf16.mxu0 0
    %659 = vmatpush1.bf16.msra.mxu0 %v628
    %660 = vmatprep.subr.bf16.mxu0 0
    %661 = vmatpush2.bf16.msra.mxu0 0
    %662 = vmatprep.subr.bf16.mxu0 0
    %663 = vmatpush2.bf16.msra.mxu0 0
    %664 = vmatprep.subr.bf16.mxu0 0
    %665 = vmatpush2.bf16.msra.mxu0 0
    %666 = vmatprep.subr.bf16.mxu0 0
    %667 = vmatpush2.bf16.msra.mxu0 0
    %668 = vmatprep.subr.bf16.mxu0 0
    %669 = vmatpush2.bf16.msra.mxu0 0
    %670 = vmatprep.subr.bf16.mxu0 0
    %671 = vmatpush2.bf16.msra.mxu0 0
    %672 = vmatprep.subr.bf16.mxu0 0
    %673 = vmatpush2.bf16.msra.mxu0 0
    %674 = vmatprep.subr.bf16.mxu0 0
    %675 = vmatpush2.bf16.msra.mxu0 0
    %676 = vmatprep.mubr.bf16.mxu0 0
    %677 = vmatmul.mubr.bf16.gmra.mxu0 %v595
    %v678 = vpop.f32.mrf.mxu0
    %v679 = vadd.f32 %v590, %v678
    %v680 = vpop.f32.mrf.mxu0
    %v681 = vpop.f32.mrf.mxu0
    %v682 = vpop.f32.mrf.mxu0
    %683 = vdwg.mxu0
    %v684 = vmax.f32 %v679, 0.0
    %v685 = vpack.c.bf16 %v684, %v684
    %v687 = vlaneseq
    %v688 = vshrl.u32 %v687, 7
    %v689 = vsub.s32 0, %v688
    %v690 = vrot.slane %v592, %v689
    %v691 = vlaneseq
    %v692 = vshrl.u32 %v691, 7
    %v693 = vsub.s32 1, %v692
    %v694 = vrot.slane %v592, %v693
    %v713 = vunpack.c.l.b16 %v541
    %v714 = vunpack.c.h.b16 %v541
    %v715 = vunpack.c.l.b16 %v542
    %v716 = vunpack.c.h.b16 %v542
    %v717 = vunpack.c.l.b16 %v543
    %v718 = vunpack.c.h.b16 %v543
    %v719 = vunpack.c.l.b16 %v544
    %v720 = vunpack.c.h.b16 %v544
    %v721 = vunpack.c.l.b16 %v545
    %v722 = vunpack.c.h.b16 %v545
    %v723 = vunpack.c.l.b16 %v546
    %v724 = vunpack.c.h.b16 %v546
    %v725 = vunpack.c.l.b16 %v547
    %v726 = vunpack.c.h.b16 %v547
    %v727 = vunpack.c.l.b16 %v548
    %v728 = vunpack.c.h.b16 %v548
    %v729 = vunpack.c.l.b16 %v549
    %v730 = vunpack.c.h.b16 %v549
    %v731 = vunpack.c.l.b16 %v550
    %v732 = vunpack.c.h.b16 %v550
    %v733 = vunpack.c.l.b16 %v551
    %v734 = vunpack.c.h.b16 %v551
    %v735 = vunpack.c.l.b16 %v552
    %v736 = vunpack.c.h.b16 %v552
    %v737 = vunpack.c.l.b16 %v553
    %v738 = vunpack.c.h.b16 %v553
    %v739 = vunpack.c.l.b16 %v554
    %v740 = vunpack.c.h.b16 %v554
    %v741 = vunpack.c.l.b16 %v555
    %v742 = vunpack.c.h.b16 %v555
    %v743 = vunpack.c.l.b16 %v556
    %v744 = vunpack.c.h.b16 %v556
    %v745 = vpack.c.b16 %v715, %v713
    %v746 = vpack.c.b16 %v716, %v714
    %v747 = vpack.c.b16 %v719, %v717
    %v748 = vpack.c.b16 %v720, %v718
    %v749 = vpack.c.b16 %v723, %v721
    %v750 = vpack.c.b16 %v724, %v722
    %v751 = vpack.c.b16 %v727, %v725
    %v752 = vpack.c.b16 %v728, %v726
    %v753 = vpack.c.b16 %v731, %v729
    %v754 = vpack.c.b16 %v732, %v730
    %v755 = vpack.c.b16 %v735, %v733
    %v756 = vpack.c.b16 %v736, %v734
    %v757 = vpack.c.b16 %v739, %v737
    %v758 = vpack.c.b16 %v740, %v738
    %v759 = vpack.c.b16 %v743, %v741
    %v760 = vpack.c.b16 %v744, %v742
    %777 = vmatprep.subr.bf16.mxu0 %v760
    %778 = vmatpush1.bf16.msra.mxu0 %v759
    %779 = vmatprep.subr.bf16.mxu0 %v758
    %780 = vmatpush1.bf16.msra.mxu0 %v757
    %781 = vmatprep.subr.bf16.mxu0 %v756
    %782 = vmatpush1.bf16.msra.mxu0 %v755
    %783 = vmatprep.subr.bf16.mxu0 %v754
    %784 = vmatpush1.bf16.msra.mxu0 %v753
    %785 = vmatprep.subr.bf16.mxu0 %v752
    %786 = vmatpush1.bf16.msra.mxu0 %v751
    %787 = vmatprep.subr.bf16.mxu0 %v750
    %788 = vmatpush1.bf16.msra.mxu0 %v749
    %789 = vmatprep.subr.bf16.mxu0 %v748
    %790 = vmatpush1.bf16.msra.mxu0 %v747
    %791 = vmatprep.subr.bf16.mxu0 %v746
    %792 = vmatpush1.bf16.msra.mxu0 %v745
    %793 = vmatprep.subr.bf16.mxu0 0
    %794 = vmatpush2.bf16.msra.mxu0 0
    %795 = vmatprep.subr.bf16.mxu0 0
    %796 = vmatpush2.bf16.msra.mxu0 0
    %797 = vmatprep.subr.bf16.mxu0 0
    %798 = vmatpush2.bf16.msra.mxu0 0
    %799 = vmatprep.subr.bf16.mxu0 0
    %800 = vmatpush2.bf16.msra.mxu0 0
    %801 = vmatprep.subr.bf16.mxu0 0
    %802 = vmatpush2.bf16.msra.mxu0 0
    %803 = vmatprep.subr.bf16.mxu0 0
    %804 = vmatpush2.bf16.msra.mxu0 0
    %805 = vmatprep.subr.bf16.mxu0 0
    %806 = vmatpush2.bf16.msra.mxu0 0
    %807 = vmatprep.subr.bf16.mxu0 0
    %808 = vmatpush2.bf16.msra.mxu0 0
    %809 = vmatprep.mubr.bf16.mxu0 0
    %810 = vmatmul.mubr.bf16.gmra.mxu0 %v685
    %v811 = vpop.f32.mrf.mxu0
    %v812 = vadd.f32 %v690, %v811
    %v813 = vpop.f32.mrf.mxu0
    %v814 = vadd.f32 %v694, %v813
    %v815 = vpop.f32.mrf.mxu0
    %v816 = vpop.f32.mrf.mxu0
    %817 = vdwg.mxu0
    %v818 = vmul.f32 %v814, 0.5
    %v819 = vmul.f32 %v818, 1.442695
    %v820 = vpow.pop %v819
    %v821 = vmul.f32 %v820, %v523
    %v822 = vadd.f32 %v812, %v821
    %v823 = vpack.c.bf16 %v822, %v822
    %v840 = vunpack.c.l.b16 %v557
    %v841 = vunpack.c.l.b16 %v558
    %v842 = vunpack.c.l.b16 %v559
    %v843 = vunpack.c.l.b16 %v560
    %v844 = vunpack.c.l.b16 %v561
    %v845 = vunpack.c.l.b16 %v562
    %v846 = vunpack.c.l.b16 %v563
    %v847 = vunpack.c.l.b16 %v564
    %v848 = vunpack.c.l.b16 %v565
    %v849 = vunpack.c.l.b16 %v566
    %v850 = vunpack.c.l.b16 %v567
    %v851 = vunpack.c.l.b16 %v568
    %v852 = vunpack.c.l.b16 %v569
    %v853 = vunpack.c.l.b16 %v570
    %v854 = vunpack.c.l.b16 %v571
    %v855 = vunpack.c.l.b16 %v572
    %v856 = vpack.c.b16 %v841, %v840
    %v857 = vpack.c.b16 %v843, %v842
    %v858 = vpack.c.b16 %v845, %v844
    %v859 = vpack.c.b16 %v847, %v846
    %v860 = vpack.c.b16 %v849, %v848
    %v861 = vpack.c.b16 %v851, %v850
    %v862 = vpack.c.b16 %v853, %v852
    %v863 = vpack.c.b16 %v855, %v854
    %872 = vmatprep.subr.bf16.mxu0 0
    %873 = vmatpush1.bf16.msra.mxu0 %v863
    %874 = vmatprep.subr.bf16.mxu0 0
    %875 = vmatpush1.bf16.msra.mxu0 %v862
    %876 = vmatprep.subr.bf16.mxu0 0
    %877 = vmatpush1.bf16.msra.mxu0 %v861
    %878 = vmatprep.subr.bf16.mxu0 0
    %879 = vmatpush1.bf16.msra.mxu0 %v860
    %880 = vmatprep.subr.bf16.mxu0 0
    %881 = vmatpush1.bf16.msra.mxu0 %v859
    %882 = vmatprep.subr.bf16.mxu0 0
    %883 = vmatpush1.bf16.msra.mxu0 %v858
    %884 = vmatprep.subr.bf16.mxu0 0
    %885 = vmatpush1.bf16.msra.mxu0 %v857
    %886 = vmatprep.subr.bf16.mxu0 0
    %887 = vmatpush1.bf16.msra.mxu0 %v856
    %888 = vmatprep.subr.bf16.mxu0 0
    %889 = vmatpush2.bf16.msra.mxu0 0
    %890 = vmatprep.subr.bf16.mxu0 0
    %891 = vmatpush2.bf16.msra.mxu0 0
    %892 = vmatprep.subr.bf16.mxu0 0
    %893 = vmatpush2.bf16.msra.mxu0 0
    %894 = vmatprep.subr.bf16.mxu0 0
    %895 = vmatpush2.bf16.msra.mxu0 0
    %896 = vmatprep.subr.bf16.mxu0 0
    %897 = vmatpush2.bf16.msra.mxu0 0
    %898 = vmatprep.subr.bf16.mxu0 0
    %899 = vmatpush2.bf16.msra.mxu0 0
    %900 = vmatprep.subr.bf16.mxu0 0
    %901 = vmatpush2.bf16.msra.mxu0 0
    %902 = vmatprep.subr.bf16.mxu0 0
    %903 = vmatpush2.bf16.msra.mxu0 0
    %904 = vmatprep.mubr.bf16.mxu0 0
    %905 = vmatmul.mubr.bf16.gmra.mxu0 %v823
    %v906 = vpop.f32.mrf.mxu0
    %v907 = vadd.f32 %v593, %v906
    %v908 = vpop.f32.mrf.mxu0
    %v909 = vpop.f32.mrf.mxu0
    %v910 = vpop.f32.mrf.mxu0
    %911 = vdwg.mxu0
    %v912 = vmax.f32 %v907, 0.0
    %v913 = vpack.c.bf16 %v912, %v912
    %v930 = vunpack.c.l.b16 %v573
    %v931 = vunpack.c.l.b16 %v574
    %v932 = vunpack.c.l.b16 %v575
    %v933 = vunpack.c.l.b16 %v576
    %v934 = vunpack.c.l.b16 %v577
    %v935 = vunpack.c.l.b16 %v578
    %v936 = vunpack.c.l.b16 %v579
    %v937 = vunpack.c.l.b16 %v580
    %v938 = vunpack.c.l.b16 %v581
    %v939 = vunpack.c.l.b16 %v582
    %v940 = vunpack.c.l.b16 %v583
    %v941 = vunpack.c.l.b16 %v584
    %v942 = vunpack.c.l.b16 %v585
    %v943 = vunpack.c.l.b16 %v586
    %v944 = vunpack.c.l.b16 %v587
    %v945 = vunpack.c.l.b16 %v588
    %v946 = vpack.c.b16 %v931, %v930
    %v947 = vpack.c.b16 %v933, %v932
    %v948 = vpack.c.b16 %v935, %v934
    %v949 = vpack.c.b16 %v937, %v936
    %v950 = vpack.c.b16 %v939, %v938
    %v951 = vpack.c.b16 %v941, %v940
    %v952 = vpack.c.b16 %v943, %v942
    %v953 = vpack.c.b16 %v945, %v944
    %962 = vmatprep.subr.bf16.mxu0 0
    %963 = vmatpush1.bf16.msra.mxu0 %v953
    %964 = vmatprep.subr.bf16.mxu0 0
    %965 = vmatpush1.bf16.msra.mxu0 %v952
    %966 = vmatprep.subr.bf16.mxu0 0
    %967 = vmatpush1.bf16.msra.mxu0 %v951
    %968 = vmatprep.subr.bf16.mxu0 0
    %969 = vmatpush1.bf16.msra.mxu0 %v950
    %970 = vmatprep.subr.bf16.mxu0 0
    %971 = vmatpush1.bf16.msra.mxu0 %v949
    %972 = vmatprep.subr.bf16.mxu0 0
    %973 = vmatpush1.bf16.msra.mxu0 %v948
    %974 = vmatprep.subr.bf16.mxu0 0
    %975 = vmatpush1.bf16.msra.mxu0 %v947
    %976 = vmatprep.subr.bf16.mxu0 0
    %977 = vmatpush1.bf16.msra.mxu0 %v946
    %978 = vmatprep.subr.bf16.mxu0 0
    %979 = vmatpush2.bf16.msra.mxu0 0
    %980 = vmatprep.subr.bf16.mxu0 0
    %981 = vmatpush2.bf16.msra.mxu0 0
    %982 = vmatprep.subr.bf16.mxu0 0
    %983 = vmatpush2.bf16.msra.mxu0 0
    %984 = vmatprep.subr.bf16.mxu0 0
    %985 = vmatpush2.bf16.msra.mxu0 0
    %986 = vmatprep.subr.bf16.mxu0 0
    %987 = vmatpush2.bf16.msra.mxu0 0
    %988 = vmatprep.subr.bf16.mxu0 0
    %989 = vmatpush2.bf16.msra.mxu0 0
    %990 = vmatprep.subr.bf16.mxu0 0
    %991 = vmatpush2.bf16.msra.mxu0 0
    %992 = vmatprep.subr.bf16.mxu0 0
    %993 = vmatpush2.bf16.msra.mxu0 0
    %994 = vmatprep.mubr.bf16.mxu0 0
    %995 = vmatmul.mubr.bf16.gmra.mxu0 %v913
    %v996 = vpop.f32.mrf.mxu0
    %v997 = vadd.f32 %v594, %v996
    %v998 = vpop.f32.mrf.mxu0
    %v999 = vpop.f32.mrf.mxu0
    %v1000 = vpop.f32.mrf.mxu0
    %1001 = vdwg.mxu0
    %v1002 = vxor.u32 %v997, 2147483648
    %v1003 = vmul.f32 %v1002, 1.442695
    %v1004 = vpow.pop %v1003
    %v1005 = vadd.f32 %v1004, 1.0
    %v1006 = vrcp.pop %v1005
    %v1007 = vmul.f32 1.0, %v1006
    %s1008 = scalar_lea.vmem %s4, 32
    %1009 = vst [vmem:[%s1008] sm:$0xff] %v1007
    %1010 = vst [vmem:[%s1008 + $0x8] sm:$0xff] %v812
    %1011 = vst [vmem:[%s1008 + $0x10] sm:$0xff] %v814
    %1012 = vst [vmem:[%s1008 + $0x18] sm:$0xff] %v822
    %s1013 = scalar_lea.vmem %s0, 16
    %v1014 = vld [vmem:[%s1013] sm:$0xff]
    %s1015 = scalar_lea.vmem %s1, 16
    %v1016 = vld [vmem:[%s1015] sm:$0xff]
    %s1017 = scalar_lea.vmem [#allocation2], 1024
    %v1018 = vld [vmem:[%s1017] sm:$0xf]
    %v1019 = vld [vmem:[%s1017 + $0x8] sm:$0xf]
    %v1020 = vld [vmem:[%s1017 + $0x10] sm:$0xf]
    %v1021 = vld [vmem:[%s1017 + $0x18] sm:$0xf]
    %v1022 = vld [vmem:[%s1017 + $0x20] sm:$0xf]
    %v1023 = vld [vmem:[%s1017 + $0x28] sm:$0xf]
    %v1024 = vld [vmem:[%s1017 + $0x30] sm:$0xf]
    %v1025 = vld [vmem:[%s1017 + $0x38] sm:$0xf]
    %v1026 = vld [vmem:[%s1017 + $0x40] sm:$0xf]
    %v1027 = vld [vmem:[%s1017 + $0x48] sm:$0xf]
    %v1028 = vld [vmem:[%s1017 + $0x50] sm:$0xf]
    %v1029 = vld [vmem:[%s1017 + $0x58] sm:$0xf]
    %v1030 = vld [vmem:[%s1017 + $0x60] sm:$0xf]
    %v1031 = vld [vmem:[%s1017 + $0x68] sm:$0xf]
    %v1032 = vld [vmem:[%s1017 + $0x70] sm:$0xf]
    %v1033 = vld [vmem:[%s1017 + $0x78] sm:$0xf]
    %v1034 = vld [vmem:[%s1017 + $0x80] sm:$0xff]
    %v1035 = vld [vmem:[%s1017 + $0x88] sm:$0xff]
    %v1036 = vld [vmem:[%s1017 + $0x90] sm:$0xff]
    %v1037 = vld [vmem:[%s1017 + $0x98] sm:$0xff]
    %v1038 = vld [vmem:[%s1017 + $0xa0] sm:$0xff]
    %v1039 = vld [vmem:[%s1017 + $0xa8] sm:$0xff]
    %v1040 = vld [vmem:[%s1017 + $0xb0] sm:$0xff]
    %v1041 = vld [vmem:[%s1017 + $0xb8] sm:$0xff]
    %v1042 = vld [vmem:[%s1017 + $0xc0] sm:$0xff]
    %v1043 = vld [vmem:[%s1017 + $0xc8] sm:$0xff]
    %v1044 = vld [vmem:[%s1017 + $0xd0] sm:$0xff]
    %v1045 = vld [vmem:[%s1017 + $0xd8] sm:$0xff]
    %v1046 = vld [vmem:[%s1017 + $0xe0] sm:$0xff]
    %v1047 = vld [vmem:[%s1017 + $0xe8] sm:$0xff]
    %v1048 = vld [vmem:[%s1017 + $0xf0] sm:$0xff]
    %v1049 = vld [vmem:[%s1017 + $0xf8] sm:$0xff]
    %v1050 = vld [vmem:[%s1017 + $0x100] sm:$0xf]
    %v1051 = vld [vmem:[%s1017 + $0x108] sm:$0xf]
    %v1052 = vld [vmem:[%s1017 + $0x110] sm:$0xf]
    %v1053 = vld [vmem:[%s1017 + $0x118] sm:$0xf]
    %v1054 = vld [vmem:[%s1017 + $0x120] sm:$0xf]
    %v1055 = vld [vmem:[%s1017 + $0x128] sm:$0xf]
    %v1056 = vld [vmem:[%s1017 + $0x130] sm:$0xf]
    %v1057 = vld [vmem:[%s1017 + $0x138] sm:$0xf]
    %v1058 = vld [vmem:[%s1017 + $0x140] sm:$0xf]
    %v1059 = vld [vmem:[%s1017 + $0x148] sm:$0xf]
    %v1060 = vld [vmem:[%s1017 + $0x150] sm:$0xf]
    %v1061 = vld [vmem:[%s1017 + $0x158] sm:$0xf]
    %v1062 = vld [vmem:[%s1017 + $0x160] sm:$0xf]
    %v1063 = vld [vmem:[%s1017 + $0x168] sm:$0xf]
    %v1064 = vld [vmem:[%s1017 + $0x170] sm:$0xf]
    %v1065 = vld [vmem:[%s1017 + $0x178] sm:$0xf]
    %v1066 = vld [vmem:[%s1017 + $0x180] sm:$0xf]
    %v1067 = vld [vmem:[%s1017 + $0x188] sm:$0xf]
    %v1068 = vld [vmem:[%s1017 + $0x190] sm:$0xf]
    %v1069 = vld [vmem:[%s1017 + $0x198] sm:$0xf]
    %v1070 = vld [vmem:[%s1017 + $0x1a0] sm:$0xf]
    %v1071 = vld [vmem:[%s1017 + $0x1a8] sm:$0xf]
    %v1072 = vld [vmem:[%s1017 + $0x1b0] sm:$0xf]
    %v1073 = vld [vmem:[%s1017 + $0x1b8] sm:$0xf]
    %v1074 = vld [vmem:[%s1017 + $0x1c0] sm:$0xf]
    %v1075 = vld [vmem:[%s1017 + $0x1c8] sm:$0xf]
    %v1076 = vld [vmem:[%s1017 + $0x1d0] sm:$0xf]
    %v1077 = vld [vmem:[%s1017 + $0x1d8] sm:$0xf]
    %v1078 = vld [vmem:[%s1017 + $0x1e0] sm:$0xf]
    %v1079 = vld [vmem:[%s1017 + $0x1e8] sm:$0xf]
    %v1080 = vld [vmem:[%s1017 + $0x1f0] sm:$0xf]
    %v1081 = vld [vmem:[%s1017 + $0x1f8] sm:$0xf]
    %s1082 = scalar_lea.vmem %s3, 32
    %v1083 = vld [vmem:[%s1082] ss:$0 sm:$0xff]
    %s1084 = scalar_lea.vmem %s1082, 1
    %v1085 = vld [vmem:[%s1084] ss:$8 sm:$0x3]
    %v1086 = vld [vmem:[%s1082 + $0x2] ss:$0 sm:$0xff]
    %v1087 = vld [vmem:[%s1082 + $0x3] ss:$0 sm:$0xff]
    %v1088 = vpack.c.bf16 %v1014, %v1014
    %v1105 = vunpack.c.l.b16 %v1018
    %v1106 = vunpack.c.l.b16 %v1019
    %v1107 = vunpack.c.l.b16 %v1020
    %v1108 = vunpack.c.l.b16 %v1021
    %v1109 = vunpack.c.l.b16 %v1022
    %v1110 = vunpack.c.l.b16 %v1023
    %v1111 = vunpack.c.l.b16 %v1024
    %v1112 = vunpack.c.l.b16 %v1025
    %v1113 = vunpack.c.l.b16 %v1026
    %v1114 = vunpack.c.l.b16 %v1027
    %v1115 = vunpack.c.l.b16 %v1028
    %v1116 = vunpack.c.l.b16 %v1029
    %v1117 = vunpack.c.l.b16 %v1030
    %v1118 = vunpack.c.l.b16 %v1031
    %v1119 = vunpack.c.l.b16 %v1032
    %v1120 = vunpack.c.l.b16 %v1033
    %v1121 = vpack.c.b16 %v1106, %v1105
    %v1122 = vpack.c.b16 %v1108, %v1107
    %v1123 = vpack.c.b16 %v1110, %v1109
    %v1124 = vpack.c.b16 %v1112, %v1111
    %v1125 = vpack.c.b16 %v1114, %v1113
    %v1126 = vpack.c.b16 %v1116, %v1115
    %v1127 = vpack.c.b16 %v1118, %v1117
    %v1128 = vpack.c.b16 %v1120, %v1119
    %1137 = vmatprep.subr.bf16.mxu0 0
    %1138 = vmatpush1.bf16.msra.mxu0 %v1128
    %1139 = vmatprep.subr.bf16.mxu0 0
    %1140 = vmatpush1.bf16.msra.mxu0 %v1127
    %1141 = vmatprep.subr.bf16.mxu0 0
    %1142 = vmatpush1.bf16.msra.mxu0 %v1126
    %1143 = vmatprep.subr.bf16.mxu0 0
    %1144 = vmatpush1.bf16.msra.mxu0 %v1125
    %1145 = vmatprep.subr.bf16.mxu0 0
    %1146 = vmatpush1.bf16.msra.mxu0 %v1124
    %1147 = vmatprep.subr.bf16.mxu0 0
    %1148 = vmatpush1.bf16.msra.mxu0 %v1123
    %1149 = vmatprep.subr.bf16.mxu0 0
    %1150 = vmatpush1.bf16.msra.mxu0 %v1122
    %1151 = vmatprep.subr.bf16.mxu0 0
    %1152 = vmatpush1.bf16.msra.mxu0 %v1121
    %1153 = vmatprep.subr.bf16.mxu0 0
    %1154 = vmatpush2.bf16.msra.mxu0 0
    %1155 = vmatprep.subr.bf16.mxu0 0
    %1156 = vmatpush2.bf16.msra.mxu0 0
    %1157 = vmatprep.subr.bf16.mxu0 0
    %1158 = vmatpush2.bf16.msra.mxu0 0
    %1159 = vmatprep.subr.bf16.mxu0 0
    %1160 = vmatpush2.bf16.msra.mxu0 0
    %1161 = vmatprep.subr.bf16.mxu0 0
    %1162 = vmatpush2.bf16.msra.mxu0 0
    %1163 = vmatprep.subr.bf16.mxu0 0
    %1164 = vmatpush2.bf16.msra.mxu0 0
    %1165 = vmatprep.subr.bf16.mxu0 0
    %1166 = vmatpush2.bf16.msra.mxu0 0
    %1167 = vmatprep.subr.bf16.mxu0 0
    %1168 = vmatpush2.bf16.msra.mxu0 0
    %1169 = vmatprep.mubr.bf16.mxu0 0
    %1170 = vmatmul.mubr.bf16.gmra.mxu0 %v1088
    %v1171 = vpop.f32.mrf.mxu0
    %v1172 = vadd.f32 %v1083, %v1171
    %v1173 = vpop.f32.mrf.mxu0
    %v1174 = vpop.f32.mrf.mxu0
    %v1175 = vpop.f32.mrf.mxu0
    %1176 = vdwg.mxu0
    %v1177 = vmax.f32 %v1172, 0.0
    %v1178 = vpack.c.bf16 %v1177, %v1177
    %v1180 = vlaneseq
    %v1181 = vshrl.u32 %v1180, 7
    %v1182 = vsub.s32 0, %v1181
    %v1183 = vrot.slane %v1085, %v1182
    %v1184 = vlaneseq
    %v1185 = vshrl.u32 %v1184, 7
    %v1186 = vsub.s32 1, %v1185
    %v1187 = vrot.slane %v1085, %v1186
    %v1206 = vunpack.c.l.b16 %v1034
    %v1207 = vunpack.c.h.b16 %v1034
    %v1208 = vunpack.c.l.b16 %v1035
    %v1209 = vunpack.c.h.b16 %v1035
    %v1210 = vunpack.c.l.b16 %v1036
    %v1211 = vunpack.c.h.b16 %v1036
    %v1212 = vunpack.c.l.b16 %v1037
    %v1213 = vunpack.c.h.b16 %v1037
    %v1214 = vunpack.c.l.b16 %v1038
    %v1215 = vunpack.c.h.b16 %v1038
    %v1216 = vunpack.c.l.b16 %v1039
    %v1217 = vunpack.c.h.b16 %v1039
    %v1218 = vunpack.c.l.b16 %v1040
    %v1219 = vunpack.c.h.b16 %v1040
    %v1220 = vunpack.c.l.b16 %v1041
    %v1221 = vunpack.c.h.b16 %v1041
    %v1222 = vunpack.c.l.b16 %v1042
    %v1223 = vunpack.c.h.b16 %v1042
    %v1224 = vunpack.c.l.b16 %v1043
    %v1225 = vunpack.c.h.b16 %v1043
    %v1226 = vunpack.c.l.b16 %v1044
    %v1227 = vunpack.c.h.b16 %v1044
    %v1228 = vunpack.c.l.b16 %v1045
    %v1229 = vunpack.c.h.b16 %v1045
    %v1230 = vunpack.c.l.b16 %v1046
    %v1231 = vunpack.c.h.b16 %v1046
    %v1232 = vunpack.c.l.b16 %v1047
    %v1233 = vunpack.c.h.b16 %v1047
    %v1234 = vunpack.c.l.b16 %v1048
    %v1235 = vunpack.c.h.b16 %v1048
    %v1236 = vunpack.c.l.b16 %v1049
    %v1237 = vunpack.c.h.b16 %v1049
    %v1238 = vpack.c.b16 %v1208, %v1206
    %v1239 = vpack.c.b16 %v1209, %v1207
    %v1240 = vpack.c.b16 %v1212, %v1210
    %v1241 = vpack.c.b16 %v1213, %v1211
    %v1242 = vpack.c.b16 %v1216, %v1214
    %v1243 = vpack.c.b16 %v1217, %v1215
    %v1244 = vpack.c.b16 %v1220, %v1218
    %v1245 = vpack.c.b16 %v1221, %v1219
    %v1246 = vpack.c.b16 %v1224, %v1222
    %v1247 = vpack.c.b16 %v1225, %v1223
    %v1248 = vpack.c.b16 %v1228, %v1226
    %v1249 = vpack.c.b16 %v1229, %v1227
    %v1250 = vpack.c.b16 %v1232, %v1230
    %v1251 = vpack.c.b16 %v1233, %v1231
    %v1252 = vpack.c.b16 %v1236, %v1234
    %v1253 = vpack.c.b16 %v1237, %v1235
    %1270 = vmatprep.subr.bf16.mxu0 %v1253
    %1271 = vmatpush1.bf16.msra.mxu0 %v1252
    %1272 = vmatprep.subr.bf16.mxu0 %v1251
    %1273 = vmatpush1.bf16.msra.mxu0 %v1250
    %1274 = vmatprep.subr.bf16.mxu0 %v1249
    %1275 = vmatpush1.bf16.msra.mxu0 %v1248
    %1276 = vmatprep.subr.bf16.mxu0 %v1247
    %1277 = vmatpush1.bf16.msra.mxu0 %v1246
    %1278 = vmatprep.subr.bf16.mxu0 %v1245
    %1279 = vmatpush1.bf16.msra.mxu0 %v1244
    %1280 = vmatprep.subr.bf16.mxu0 %v1243
    %1281 = vmatpush1.bf16.msra.mxu0 %v1242
    %1282 = vmatprep.subr.bf16.mxu0 %v1241
    %1283 = vmatpush1.bf16.msra.mxu0 %v1240
    %1284 = vmatprep.subr.bf16.mxu0 %v1239
    %1285 = vmatpush1.bf16.msra.mxu0 %v1238
    %1286 = vmatprep.subr.bf16.mxu0 0
    %1287 = vmatpush2.bf16.msra.mxu0 0
    %1288 = vmatprep.subr.bf16.mxu0 0
    %1289 = vmatpush2.bf16.msra.mxu0 0
    %1290 = vmatprep.subr.bf16.mxu0 0
    %1291 = vmatpush2.bf16.msra.mxu0 0
    %1292 = vmatprep.subr.bf16.mxu0 0
    %1293 = vmatpush2.bf16.msra.mxu0 0
    %1294 = vmatprep.subr.bf16.mxu0 0
    %1295 = vmatpush2.bf16.msra.mxu0 0
    %1296 = vmatprep.subr.bf16.mxu0 0
    %1297 = vmatpush2.bf16.msra.mxu0 0
    %1298 = vmatprep.subr.bf16.mxu0 0
    %1299 = vmatpush2.bf16.msra.mxu0 0
    %1300 = vmatprep.subr.bf16.mxu0 0
    %1301 = vmatpush2.bf16.msra.mxu0 0
    %1302 = vmatprep.mubr.bf16.mxu0 0
    %1303 = vmatmul.mubr.bf16.gmra.mxu0 %v1178
    %v1304 = vpop.f32.mrf.mxu0
    %v1305 = vadd.f32 %v1183, %v1304
    %v1306 = vpop.f32.mrf.mxu0
    %v1307 = vadd.f32 %v1187, %v1306
    %v1308 = vpop.f32.mrf.mxu0
    %v1309 = vpop.f32.mrf.mxu0
    %1310 = vdwg.mxu0
    %v1311 = vmul.f32 %v1307, 0.5
    %v1312 = vmul.f32 %v1311, 1.442695
    %v1313 = vpow.pop %v1312
    %v1314 = vmul.f32 %v1313, %v1016
    %v1315 = vadd.f32 %v1305, %v1314
    %v1316 = vpack.c.bf16 %v1315, %v1315
    %v1333 = vunpack.c.l.b16 %v1050
    %v1334 = vunpack.c.l.b16 %v1051
    %v1335 = vunpack.c.l.b16 %v1052
    %v1336 = vunpack.c.l.b16 %v1053
    %v1337 = vunpack.c.l.b16 %v1054
    %v1338 = vunpack.c.l.b16 %v1055
    %v1339 = vunpack.c.l.b16 %v1056
    %v1340 = vunpack.c.l.b16 %v1057
    %v1341 = vunpack.c.l.b16 %v1058
    %v1342 = vunpack.c.l.b16 %v1059
    %v1343 = vunpack.c.l.b16 %v1060
    %v1344 = vunpack.c.l.b16 %v1061
    %v1345 = vunpack.c.l.b16 %v1062
    %v1346 = vunpack.c.l.b16 %v1063
    %v1347 = vunpack.c.l.b16 %v1064
    %v1348 = vunpack.c.l.b16 %v1065
    %v1349 = vpack.c.b16 %v1334, %v1333
    %v1350 = vpack.c.b16 %v1336, %v1335
    %v1351 = vpack.c.b16 %v1338, %v1337
    %v1352 = vpack.c.b16 %v1340, %v1339
    %v1353 = vpack.c.b16 %v1342, %v1341
    %v1354 = vpack.c.b16 %v1344, %v1343
    %v1355 = vpack.c.b16 %v1346, %v1345
    %v1356 = vpack.c.b16 %v1348, %v1347
    %1365 = vmatprep.subr.bf16.mxu0 0
    %1366 = vmatpush1.bf16.msra.mxu0 %v1356
    %1367 = vmatprep.subr.bf16.mxu0 0
    %1368 = vmatpush1.bf16.msra.mxu0 %v1355
    %1369 = vmatprep.subr.bf16.mxu0 0
    %1370 = vmatpush1.bf16.msra.mxu0 %v1354
    %1371 = vmatprep.subr.bf16.mxu0 0
    %1372 = vmatpush1.bf16.msra.mxu0 %v1353
    %1373 = vmatprep.subr.bf16.mxu0 0
    %1374 = vmatpush1.bf16.msra.mxu0 %v1352
    %1375 = vmatprep.subr.bf16.mxu0 0
    %1376 = vmatpush1.bf16.msra.mxu0 %v1351
    %1377 = vmatprep.subr.bf16.mxu0 0
    %1378 = vmatpush1.bf16.msra.mxu0 %v1350
    %1379 = vmatprep.subr.bf16.mxu0 0
    %1380 = vmatpush1.bf16.msra.mxu0 %v1349
    %1381 = vmatprep.subr.bf16.mxu0 0
    %1382 = vmatpush2.bf16.msra.mxu0 0
    %1383 = vmatprep.subr.bf16.mxu0 0
    %1384 = vmatpush2.bf16.msra.mxu0 0
    %1385 = vmatprep.subr.bf16.mxu0 0
    %1386 = vmatpush2.bf16.msra.mxu0 0
    %1387 = vmatprep.subr.bf16.mxu0 0
    %1388 = vmatpush2.bf16.msra.mxu0 0
    %1389 = vmatprep.subr.bf16.mxu0 0
    %1390 = vmatpush2.bf16.msra.mxu0 0
    %1391 = vmatprep.subr.bf16.mxu0 0
    %1392 = vmatpush2.bf16.msra.mxu0 0
    %1393 = vmatprep.subr.bf16.mxu0 0
    %1394 = vmatpush2.bf16.msra.mxu0 0
    %1395 = vmatprep.subr.bf16.mxu0 0
    %1396 = vmatpush2.bf16.msra.mxu0 0
    %1397 = vmatprep.mubr.bf16.mxu0 0
    %1398 = vmatmul.mubr.bf16.gmra.mxu0 %v1316
    %v1399 = vpop.f32.mrf.mxu0
    %v1400 = vadd.f32 %v1086, %v1399
    %v1401 = vpop.f32.mrf.mxu0
    %v1402 = vpop.f32.mrf.mxu0
    %v1403 = vpop.f32.mrf.mxu0
    %1404 = vdwg.mxu0
    %v1405 = vmax.f32 %v1400, 0.0
    %v1406 = vpack.c.bf16 %v1405, %v1405
    %v1423 = vunpack.c.l.b16 %v1066
    %v1424 = vunpack.c.l.b16 %v1067
    %v1425 = vunpack.c.l.b16 %v1068
    %v1426 = vunpack.c.l.b16 %v1069
    %v1427 = vunpack.c.l.b16 %v1070
    %v1428 = vunpack.c.l.b16 %v1071
    %v1429 = vunpack.c.l.b16 %v1072
    %v1430 = vunpack.c.l.b16 %v1073
    %v1431 = vunpack.c.l.b16 %v1074
    %v1432 = vunpack.c.l.b16 %v1075
    %v1433 = vunpack.c.l.b16 %v1076
    %v1434 = vunpack.c.l.b16 %v1077
    %v1435 = vunpack.c.l.b16 %v1078
    %v1436 = vunpack.c.l.b16 %v1079
    %v1437 = vunpack.c.l.b16 %v1080
    %v1438 = vunpack.c.l.b16 %v1081
    %v1439 = vpack.c.b16 %v1424, %v1423
    %v1440 = vpack.c.b16 %v1426, %v1425
    %v1441 = vpack.c.b16 %v1428, %v1427
    %v1442 = vpack.c.b16 %v1430, %v1429
    %v1443 = vpack.c.b16 %v1432, %v1431
    %v1444 = vpack.c.b16 %v1434, %v1433
    %v1445 = vpack.c.b16 %v1436, %v1435
    %v1446 = vpack.c.b16 %v1438, %v1437
    %1455 = vmatprep.subr.bf16.mxu0 0
    %1456 = vmatpush1.bf16.msra.mxu0 %v1446
    %1457 = vmatprep.subr.bf16.mxu0 0
    %1458 = vmatpush1.bf16.msra.mxu0 %v1445
    %1459 = vmatprep.subr.bf16.mxu0 0
    %1460 = vmatpush1.bf16.msra.mxu0 %v1444
    %1461 = vmatprep.subr.bf16.mxu0 0
    %1462 = vmatpush1.bf16.msra.mxu0 %v1443
    %1463 = vmatprep.subr.bf16.mxu0 0
    %1464 = vmatpush1.bf16.msra.mxu0 %v1442
    %1465 = vmatprep.subr.bf16.mxu0 0
    %1466 = vmatpush1.bf16.msra.mxu0 %v1441
    %1467 = vmatprep.subr.bf16.mxu0 0
    %1468 = vmatpush1.bf16.msra.mxu0 %v1440
    %1469 = vmatprep.subr.bf16.mxu0 0
    %1470 = vmatpush1.bf16.msra.mxu0 %v1439
    %1471 = vmatprep.subr.bf16.mxu0 0
    %1472 = vmatpush2.bf16.msra.mxu0 0
    %1473 = vmatprep.subr.bf16.mxu0 0
    %1474 = vmatpush2.bf16.msra.mxu0 0
    %1475 = vmatprep.subr.bf16.mxu0 0
    %1476 = vmatpush2.bf16.msra.mxu0 0
    %1477 = vmatprep.subr.bf16.mxu0 0
    %1478 = vmatpush2.bf16.msra.mxu0 0
    %1479 = vmatprep.subr.bf16.mxu0 0
    %1480 = vmatpush2.bf16.msra.mxu0 0
    %1481 = vmatprep.subr.bf16.mxu0 0
    %1482 = vmatpush2.bf16.msra.mxu0 0
    %1483 = vmatprep.subr.bf16.mxu0 0
    %1484 = vmatpush2.bf16.msra.mxu0 0
    %1485 = vmatprep.subr.bf16.mxu0 0
    %1486 = vmatpush2.bf16.msra.mxu0 0
    %1487 = vmatprep.mubr.bf16.mxu0 0
    %1488 = vmatmul.mubr.bf16.gmra.mxu0 %v1406
    %v1489 = vpop.f32.mrf.mxu0
    %v1490 = vadd.f32 %v1087, %v1489
    %v1491 = vpop.f32.mrf.mxu0
    %v1492 = vpop.f32.mrf.mxu0
    %v1493 = vpop.f32.mrf.mxu0
    %1494 = vdwg.mxu0
    %v1495 = vxor.u32 %v1490, 2147483648
    %v1496 = vmul.f32 %v1495, 1.442695
    %v1497 = vpow.pop %v1496
    %v1498 = vadd.f32 %v1497, 1.0
    %v1499 = vrcp.pop %v1498
    %v1500 = vmul.f32 1.0, %v1499
    %s1501 = scalar_lea.vmem %s4, 64
    %1502 = vst [vmem:[%s1501] sm:$0xff] %v1500
    %1503 = vst [vmem:[%s1501 + $0x8] sm:$0xff] %v1305
    %1504 = vst [vmem:[%s1501 + $0x10] sm:$0xff] %v1307
    %1505 = vst [vmem:[%s1501 + $0x18] sm:$0xff] %v1315
    // Predicated region
    $region22: #{forward.1} parent=1 // pred_check
      _
    $region23: #{forward.1} parent=1 // pred_check_branch
      %1507 = sbr.rel (0) target = $region25
    $region24: #{forward.1} parent=1 // pred_region
      _
    $region25: #{forward.1} parent=1 // pred_fallthru
      _
    // Predicated region
    $region26: #{forward.1} parent=1 // pred_check
      _
    $region27: #{forward.1} parent=1 // pred_check_branch
      %1509 = sbr.rel (0) target = $region29
    $region28: #{forward.1} parent=1 // pred_region
      _
    $region29: #{forward.1} parent=1 // pred_fallthru
      _
    %1510 = vsyncpa [#allocation3], 1

</llo_original>
